<compile_context>
chip_gen: v5e
topology: v5e:2x2
jax: 0.10.0
libtpu: 0.0.40
codegen_flags: <defaults>
</compile_context>

<pallas_src>
import functools

import jax
import jax.numpy as jnp
import numpy as np
from jax import lax
from jax.experimental import pallas as pl
from jax.experimental.pallas import tpu as pltpu


def _round_up(x, m):
    return ((x + m - 1) // m) * m


def up1_kernel(x1_ref, x2_ref, mt_ref, w_ref, b_ref, ml_ref, mr_ref,
               out_ref, xpad_ref, *, c1, c2, h2, w2, base):
    hw2 = h2 * w2
    c = c1 + c2

    # ---- bilinear upsample (align_corners=True) + F.pad, folded into a
    #      single (H1*W1, H2*W2) matrix -> one MXU matmul.
    x1_up = jnp.dot(x1_ref[0], mt_ref[...],
                    preferred_element_type=jnp.float32)          # (C1, HW2)

    # ---- torch.cat([x2, x1_up], dim=1), written into a zero-padded flat
    #      spatial buffer: channels on sublanes, flat H*W on lanes.
    xpad_ref[...] = jnp.zeros_like(xpad_ref)
    xpad_ref[0:c2, pl.ds(base, hw2)] = x2_ref[0]
    xpad_ref[c2:c, pl.ds(base, hw2)] = x1_up

    # ---- 3x3 conv (padding=1, no bias) + folded BN + ReLU.
    # Each tap is a shifted slab (C, HW2) hit with a (O, C) weight matmul.
    acc = jnp.zeros(out_ref.shape[1:], jnp.float32)               # (O, HW2)
    for dy in range(3):
        for dx in range(3):
            off = base + (dy - 1) * w2 + (dx - 1)                 # static int
            slab = xpad_ref[:, pl.ds(off, hw2)]                   # (C, HW2)
            if dx == 0:
                slab = slab * ml_ref[...]      # zero contrib where x == 0
            elif dx == 2:
                slab = slab * mr_ref[...]      # zero contrib where x == W-1
            acc = acc + jnp.dot(w_ref[3 * dy + dx], slab,
                                preferred_element_type=jnp.float32)

    out_ref[0] = jnp.maximum(acc + b_ref[...], 0.0)


def _interp_matrix(n_in, n_target):
    """2x bilinear upsample (align_corners=True) + zero-pad to n_target."""
    n_up = 2 * n_in
    a = np.zeros((n_up, n_in), np.float64)
    if n_in == 1:
        a[:, 0] = 1.0
    else:
        scale = (n_in - 1) / (n_up - 1)
        for i in range(n_up):
            pos = i * scale
            i0 = min(int(np.floor(pos)), n_in - 1)
            i1 = min(i0 + 1, n_in - 1)
            f = pos - i0
            a[i, i0] += 1.0 - f
            a[i, i1] += f
    diff = n_target - n_up
    assert diff >= 0, "x2 spatial dims must be >= 2x x1 spatial dims"
    lo = diff // 2
    full = np.zeros((n_target, n_in), np.float64)
    full[lo:lo + n_up] = a
    return full


def up1_forward(x1, x2, params):
    """Pallas forward of Up1: up(x1) -> pad -> cat([x2, x1]) -> conv/BN/ReLU."""
    b, c1, h1, w1 = x1.shape
    b2, c2, h2, w2 = x2.shape
    assert b == b2
    o = params["w"].shape[0]
    cin = c1 + c2
    assert params["w"].shape[1] == cin
    hw1, hw2 = h1 * w1, h2 * w2

    # Upsample + pad matrix (Kronecker of the two 1-D interpolation matrices).
    ah = _interp_matrix(h1, h2)                                   # (H2, H1)
    aw = _interp_matrix(w1, w2)                                   # (W2, W1)
    m = np.einsum("yh,xw->yxhw", ah, aw).reshape(hw2, hw1)
    mt = jnp.asarray(m.T, jnp.float32)                            # (HW1, HW2)

    # Fold eval-mode BN scale into the conv weight; BN shift becomes the bias.
    w_eff = params["w"] * params["scale"][:, None, None, None]
    wtaps = jnp.transpose(w_eff, (2, 3, 0, 1)).reshape(9, o, cin) # (9, O, Cin)
    bias = params["shift"].astype(jnp.float32)[:, None]           # (O, 1)

    # Lane masks implementing the conv's zero padding along W.
    col = np.arange(hw2) % w2
    ml = jnp.asarray((col != 0).astype(np.float32))[None, :]      # (1, HW2)
    mr = jnp.asarray((col != w2 - 1).astype(np.float32))[None, :]

    x1f = x1.reshape(b, c1, hw1).astype(jnp.float32)
    x2f = x2.reshape(b, c2, hw2).astype(jnp.float32)

    base = _round_up(w2 + 1, 128)                   # interior starts lane-aligned
    hwpad = _round_up(base + hw2 + w2 + 1, 128)

    kernel = functools.partial(up1_kernel, c1=c1, c2=c2, h2=h2, w2=w2,
                               base=base)

    flops = 2 * b * (c1 * hw1 * hw2 + 9 * cin * o * hw2)
    bytes_accessed = 4 * (b * (c1 * hw1 + c2 * hw2 + o * hw2)
                          + hw1 * hw2 + 9 * o * cin + o + 2 * hw2)

    out_flat = pl.pallas_call(
        kernel,
        out_shape=jax.ShapeDtypeStruct((b, o, hw2), jnp.float32),
        grid_spec=pltpu.PrefetchScalarGridSpec(
            num_scalar_prefetch=0,
            grid=(b,),
            in_specs=[
                pl.BlockSpec((1, c1, hw1), lambda i: (i, 0, 0)),
                pl.BlockSpec((1, c2, hw2), lambda i: (i, 0, 0)),
                pl.BlockSpec((hw1, hw2), lambda i: (0, 0)),
                pl.BlockSpec((9, o, cin), lambda i: (0, 0, 0)),
                pl.BlockSpec((o, 1), lambda i: (0, 0)),
                pl.BlockSpec((1, hw2), lambda i: (0, 0)),
                pl.BlockSpec((1, hw2), lambda i: (0, 0)),
            ],
            out_specs=pl.BlockSpec((1, o, hw2), lambda i: (i, 0, 0)),
            scratch_shapes=[pltpu.VMEM((cin, hwpad), jnp.float32)],
        ),
        compiler_params=pltpu.CompilerParams(
            dimension_semantics=("parallel",)),
        cost_estimate=pl.CostEstimate(flops=flops, transcendentals=0,
                                      bytes_accessed=bytes_accessed),
    )(x1f, x2f, mt, wtaps, bias, ml, mr)

    return out_flat.reshape(b, o, h2, w2)


def up1_reference(x1, x2, params):
    """Pure-JAX mirror of the PyTorch Up1.forward (eval mode), for validation."""
    _, _, h1, w1 = x1.shape
    h2, w2 = x2.shape[2], x2.shape[3]
    hu, wu = 2 * h1, 2 * w1

    ys = jnp.arange(hu) * ((h1 - 1) / (hu - 1))
    xs = jnp.arange(wu) * ((w1 - 1) / (wu - 1))
    y0 = jnp.clip(jnp.floor(ys).astype(jnp.int32), 0, h1 - 1)
    y1 = jnp.clip(y0 + 1, 0, h1 - 1)
    fy = (ys - y0)[None, None, :, None]
    x0 = jnp.clip(jnp.floor(xs).astype(jnp.int32), 0, w1 - 1)
    x1i = jnp.clip(x0 + 1, 0, w1 - 1)
    fx = (xs - x0)[None, None, None, :]

    t = x1[:, :, y0, :] * (1.0 - fy) + x1[:, :, y1, :] * fy
    up = t[:, :, :, x0] * (1.0 - fx) + t[:, :, :, x1i] * fx

    dy, dx = h2 - hu, w2 - wu
    up = jnp.pad(up, ((0, 0), (0, 0),
                      (dy // 2, dy - dy // 2), (dx // 2, dx - dx // 2)))
    xcat = jnp.concatenate([x2, up], axis=1)
    conv = lax.conv_general_dilated(
        xcat, params["w"], (1, 1), ((1, 1), (1, 1)),
        dimension_numbers=("NCHW", "OIHW", "NCHW"))
    y = conv * params["scale"][None, :, None, None] \
        + params["shift"][None, :, None, None]
    return jnp.maximum(y, 0.0)


def init_params(key, c_in, c_out):
    """Synthetic Conv2d(3x3, no bias) + eval-mode BatchNorm2d parameters."""
    eps = 1e-5
    k1, k2, k3, k4, k5 = jax.random.split(key, 5)
    w = jax.random.normal(k1, (c_out, c_in, 3, 3), jnp.float32)
    w = w * (2.0 / (c_in * 9)) ** 0.5
    gamma = 1.0 + 0.1 * jax.random.normal(k2, (c_out,), jnp.float32)
    beta = 0.1 * jax.random.normal(k3, (c_out,), jnp.float32)
    rmean = 0.1 * jax.random.normal(k4, (c_out,), jnp.float32)
    rvar = jnp.abs(1.0 + 0.1 * jax.random.normal(k5, (c_out,), jnp.float32))
    scale = gamma / jnp.sqrt(rvar + eps)
    shift = beta - rmean * scale
    return dict(w=w, scale=scale, shift=shift)


if __name__ == "__main__":
    B, C1, C2, O = 2, 8, 8, 16         # in_channels = C1 + C2 = 16
    H1, W1 = 8, 8                      # x1 spatial (low-res)
    H2, W2 = 16, 16                    # x2 spatial (skip connection, 2x)

    key = jax.random.PRNGKey(0)
    k1, k2, k3 = jax.random.split(key, 3)
    x1 = jax.random.normal(k1, (B, C1, H1, W1), jnp.float32)
    x2 = jax.random.normal(k2, (B, C2, H2, W2), jnp.float32)
    params = init_params(k3, C1 + C2, O)

    out = up1_forward(x1, x2, params)
    jax.block_until_ready(out)

    out_ref = up1_reference(x1, x2, params)
    np.testing.assert_allclose(np.asarray(out), np.asarray(out_ref),
                               rtol=2e-2, atol=2e-2)

    print("KERNEL_OK")
</pallas_src>

<mosaic_0001>
module attributes {stable_mosaic.version = 11 : i64} {
  func.func @up1_kernel(%arg0: i32, %arg1: memref<1x8x64xf32, #tpu.memory_space<vmem>>, %arg2: memref<1x8x256xf32, #tpu.memory_space<vmem>>, %arg3: memref<64x256xf32, #tpu.memory_space<vmem>>, %arg4: memref<9x16x16xf32, #tpu.memory_space<vmem>>, %arg5: memref<16x1xf32, #tpu.memory_space<vmem>>, %arg6: memref<1x256xf32, #tpu.memory_space<vmem>>, %arg7: memref<1x256xf32, #tpu.memory_space<vmem>>, %arg8: memref<1x16x256xf32, #tpu.memory_space<vmem>>, %arg9: memref<16x512xf32, #tpu.memory_space<vmem>>) attributes {dimension_semantics = [#tpu.dimension_semantics<parallel>], iteration_bounds = array<i64: 2>, scalar_prefetch = 0 : i64, scratch_operands = 1 : i64, tpu.core_type = #tpu.core_type<tc>, window_params = [{transform_indices = @transform_0, window_bounds = array<i64: 1, 8, 64>}, {transform_indices = @transform_1, window_bounds = array<i64: 1, 8, 256>}, {pipeline_mode = #tpu.pipeline_mode<synchronous>, transform_indices = @transform_2, window_bounds = array<i64: 64, 256>}, {pipeline_mode = #tpu.pipeline_mode<synchronous>, transform_indices = @transform_3, window_bounds = array<i64: 9, 16, 16>}, {pipeline_mode = #tpu.pipeline_mode<synchronous>, transform_indices = @transform_4, window_bounds = array<i64: 16, 1>}, {pipeline_mode = #tpu.pipeline_mode<synchronous>, transform_indices = @transform_5, window_bounds = array<i64: 1, 256>}, {pipeline_mode = #tpu.pipeline_mode<synchronous>, transform_indices = @transform_6, window_bounds = array<i64: 1, 256>}, {transform_indices = @transform_7, window_bounds = array<i64: 1, 16, 256>}]} {
    %c0 = arith.constant 0 : index
    %c0_0 = arith.constant 0 : index
    %c0_1 = arith.constant 0 : index
    %0 = vector.load %arg1[%c0, %c0_0, %c0_1] : memref<1x8x64xf32, #tpu.memory_space<vmem>>, vector<1x8x64xf32>
    %1 = vector.shape_cast %0 : vector<1x8x64xf32> to vector<8x64xf32>
    %c0_2 = arith.constant 0 : index
    %c0_3 = arith.constant 0 : index
    %2 = vector.load %arg3[%c0_2, %c0_3] : memref<64x256xf32, #tpu.memory_space<vmem>>, vector<64x256xf32>
    %cst = arith.constant dense<0.000000e+00> : vector<8x256xf32>
    %3 = tpu.matmul %1, %2, %cst {dimension_numbers = #tpu.dot_dimension_numbers<[1], [0], [0], [1], [0, 0, 1, 1], [], []>} : vector<8x64xf32>, vector<64x256xf32>, vector<8x256xf32> -> vector<8x256xf32>
    %cst_4 = arith.constant 0.000000e+00 : f32
    %4 = vector.broadcast %cst_4 : f32 to vector<16x512xf32>
    %c0_5 = arith.constant 0 : index
    %c0_6 = arith.constant 0 : index
    %5 = vector.load %arg9[%c0_5, %c0_6] : memref<16x512xf32, #tpu.memory_space<vmem>>, vector<16x512xf32>
    tpu.vector_store %arg9[%c0_5, %c0_6], %4 {strides = array<i32>} : memref<16x512xf32, #tpu.memory_space<vmem>>, vector<16x512xf32>,
    %c0_7 = arith.constant 0 : index
    %c0_8 = arith.constant 0 : index
    %c0_9 = arith.constant 0 : index
    %6 = vector.load %arg2[%c0_7, %c0_8, %c0_9] : memref<1x8x256xf32, #tpu.memory_space<vmem>>, vector<1x8x256xf32>
    %7 = vector.shape_cast %6 : vector<1x8x256xf32> to vector<8x256xf32>
    %c0_10 = arith.constant 0 : index
    %c128 = arith.constant 128 : index
    %8 = vector.load %arg9[%c0_10, %c128] : memref<16x512xf32, #tpu.memory_space<vmem>>, vector<8x256xf32>
    tpu.vector_store %arg9[%c0_10, %c128], %7 {strides = array<i32>} : memref<16x512xf32, #tpu.memory_space<vmem>>, vector<8x256xf32>,
    %c8 = arith.constant 8 : index
    %c128_11 = arith.constant 128 : index
    %9 = vector.load %arg9[%c8, %c128_11] : memref<16x512xf32, #tpu.memory_space<vmem>>, vector<8x256xf32>
    tpu.vector_store %arg9[%c8, %c128_11], %3 {strides = array<i32>} : memref<16x512xf32, #tpu.memory_space<vmem>>, vector<8x256xf32>,
    %cst_12 = arith.constant 0.000000e+00 : f32
    %10 = vector.broadcast %cst_12 : f32 to vector<16x256xf32>
    %c0_13 = arith.constant 0 : index
    %c111 = arith.constant 111 : index
    %11 = vector.load %arg9[%c0_13, %c111] : memref<16x512xf32, #tpu.memory_space<vmem>>, vector<16x256xf32>
    %c0_14 = arith.constant 0 : index
    %c0_15 = arith.constant 0 : index
    %12 = vector.load %arg6[%c0_14, %c0_15] : memref<1x256xf32, #tpu.memory_space<vmem>>, vector<1x256xf32>
    %13 = vector.broadcast %12 : vector<1x256xf32> to vector<16x256xf32>
    %14 = arith.mulf %11, %13 : vector<16x256xf32>
    %c0_16 = arith.constant 0 : index
    %c0_17 = arith.constant 0 : index
    %c0_18 = arith.constant 0 : index
    %15 = vector.load %arg4[%c0_16, %c0_17, %c0_18] : memref<9x16x16xf32, #tpu.memory_space<vmem>>, vector<1x16x16xf32>
    %16 = vector.shape_cast %15 : vector<1x16x16xf32> to vector<16x16xf32>
    %cst_19 = arith.constant dense<0.000000e+00> : vector<16x256xf32>
    %17 = tpu.matmul %16, %14, %cst_19 {dimension_numbers = #tpu.dot_dimension_numbers<[1], [0], [0], [1], [0, 0, 1, 1], [], []>} : vector<16x16xf32>, vector<16x256xf32>, vector<16x256xf32> -> vector<16x256xf32>
    %18 = arith.addf %10, %17 : vector<16x256xf32>
    %c0_20 = arith.constant 0 : index
    %c112 = arith.constant 112 : index
    %19 = vector.load %arg9[%c0_20, %c112] : memref<16x512xf32, #tpu.memory_space<vmem>>, vector<16x256xf32>
    %c1 = arith.constant 1 : index
    %c0_21 = arith.constant 0 : index
    %c0_22 = arith.constant 0 : index
    %20 = vector.load %arg4[%c1, %c0_21, %c0_22] : memref<9x16x16xf32, #tpu.memory_space<vmem>>, vector<1x16x16xf32>
    %21 = vector.shape_cast %20 : vector<1x16x16xf32> to vector<16x16xf32>
    %cst_23 = arith.constant dense<0.000000e+00> : vector<16x256xf32>
    %22 = tpu.matmul %21, %19, %cst_23 {dimension_numbers = #tpu.dot_dimension_numbers<[1], [0], [0], [1], [0, 0, 1, 1], [], []>} : vector<16x16xf32>, vector<16x256xf32>, vector<16x256xf32> -> vector<16x256xf32>
    %23 = arith.addf %18, %22 : vector<16x256xf32>
    %c0_24 = arith.constant 0 : index
    %c113 = arith.constant 113 : index
    %24 = vector.load %arg9[%c0_24, %c113] : memref<16x512xf32, #tpu.memory_space<vmem>>, vector<16x256xf32>
    %c0_25 = arith.constant 0 : index
    %c0_26 = arith.constant 0 : index
    %25 = vector.load %arg7[%c0_25, %c0_26] : memref<1x256xf32, #tpu.memory_space<vmem>>, vector<1x256xf32>
    %26 = vector.broadcast %25 : vector<1x256xf32> to vector<16x256xf32>
    %27 = arith.mulf %24, %26 : vector<16x256xf32>
    %c2 = arith.constant 2 : index
    %c0_27 = arith.constant 0 : index
    %c0_28 = arith.constant 0 : index
    %28 = vector.load %arg4[%c2, %c0_27, %c0_28] : memref<9x16x16xf32, #tpu.memory_space<vmem>>, vector<1x16x16xf32>
    %29 = vector.shape_cast %28 : vector<1x16x16xf32> to vector<16x16xf32>
    %cst_29 = arith.constant dense<0.000000e+00> : vector<16x256xf32>
    %30 = tpu.matmul %29, %27, %cst_29 {dimension_numbers = #tpu.dot_dimension_numbers<[1], [0], [0], [1], [0, 0, 1, 1], [], []>} : vector<16x16xf32>, vector<16x256xf32>, vector<16x256xf32> -> vector<16x256xf32>
    %31 = arith.addf %23, %30 : vector<16x256xf32>
    %c0_30 = arith.constant 0 : index
    %c127 = arith.constant 127 : index
    %32 = vector.load %arg9[%c0_30, %c127] : memref<16x512xf32, #tpu.memory_space<vmem>>, vector<16x256xf32>
    %c0_31 = arith.constant 0 : index
    %c0_32 = arith.constant 0 : index
    %33 = vector.load %arg6[%c0_31, %c0_32] : memref<1x256xf32, #tpu.memory_space<vmem>>, vector<1x256xf32>
    %34 = vector.broadcast %33 : vector<1x256xf32> to vector<16x256xf32>
    %35 = arith.mulf %32, %34 : vector<16x256xf32>
    %c3 = arith.constant 3 : index
    %c0_33 = arith.constant 0 : index
    %c0_34 = arith.constant 0 : index
    %36 = vector.load %arg4[%c3, %c0_33, %c0_34] : memref<9x16x16xf32, #tpu.memory_space<vmem>>, vector<1x16x16xf32>
    %37 = vector.shape_cast %36 : vector<1x16x16xf32> to vector<16x16xf32>
    %cst_35 = arith.constant dense<0.000000e+00> : vector<16x256xf32>
    %38 = tpu.matmul %37, %35, %cst_35 {dimension_numbers = #tpu.dot_dimension_numbers<[1], [0], [0], [1], [0, 0, 1, 1], [], []>} : vector<16x16xf32>, vector<16x256xf32>, vector<16x256xf32> -> vector<16x256xf32>
    %39 = arith.addf %31, %38 : vector<16x256xf32>
    %c0_36 = arith.constant 0 : index
    %c128_37 = arith.constant 128 : index
    %40 = vector.load %arg9[%c0_36, %c128_37] : memref<16x512xf32, #tpu.memory_space<vmem>>, vector<16x256xf32>
    %c4 = arith.constant 4 : index
    %c0_38 = arith.constant 0 : index
    %c0_39 = arith.constant 0 : index
    %41 = vector.load %arg4[%c4, %c0_38, %c0_39] : memref<9x16x16xf32, #tpu.memory_space<vmem>>, vector<1x16x16xf32>
    %42 = vector.shape_cast %41 : vector<1x16x16xf32> to vector<16x16xf32>
    %cst_40 = arith.constant dense<0.000000e+00> : vector<16x256xf32>
    %43 = tpu.matmul %42, %40, %cst_40 {dimension_numbers = #tpu.dot_dimension_numbers<[1], [0], [0], [1], [0, 0, 1, 1], [], []>} : vector<16x16xf32>, vector<16x256xf32>, vector<16x256xf32> -> vector<16x256xf32>
    %44 = arith.addf %39, %43 : vector<16x256xf32>
    %c0_41 = arith.constant 0 : index
    %c129 = arith.constant 129 : index
    %45 = vector.load %arg9[%c0_41, %c129] : memref<16x512xf32, #tpu.memory_space<vmem>>, vector<16x256xf32>
    %c0_42 = arith.constant 0 : index
    %c0_43 = arith.constant 0 : index
    %46 = vector.load %arg7[%c0_42, %c0_43] : memref<1x256xf32, #tpu.memory_space<vmem>>, vector<1x256xf32>
    %47 = vector.broadcast %46 : vector<1x256xf32> to vector<16x256xf32>
    %48 = arith.mulf %45, %47 : vector<16x256xf32>
    %c5 = arith.constant 5 : index
    %c0_44 = arith.constant 0 : index
    %c0_45 = arith.constant 0 : index
    %49 = vector.load %arg4[%c5, %c0_44, %c0_45] : memref<9x16x16xf32, #tpu.memory_space<vmem>>, vector<1x16x16xf32>
    %50 = vector.shape_cast %49 : vector<1x16x16xf32> to vector<16x16xf32>
    %cst_46 = arith.constant dense<0.000000e+00> : vector<16x256xf32>
    %51 = tpu.matmul %50, %48, %cst_46 {dimension_numbers = #tpu.dot_dimension_numbers<[1], [0], [0], [1], [0, 0, 1, 1], [], []>} : vector<16x16xf32>, vector<16x256xf32>, vector<16x256xf32> -> vector<16x256xf32>
    %52 = arith.addf %44, %51 : vector<16x256xf32>
    %c0_47 = arith.constant 0 : index
    %c143 = arith.constant 143 : index
    %53 = vector.load %arg9[%c0_47, %c143] : memref<16x512xf32, #tpu.memory_space<vmem>>, vector<16x256xf32>
    %c0_48 = arith.constant 0 : index
    %c0_49 = arith.constant 0 : index
    %54 = vector.load %arg6[%c0_48, %c0_49] : memref<1x256xf32, #tpu.memory_space<vmem>>, vector<1x256xf32>
    %55 = vector.broadcast %54 : vector<1x256xf32> to vector<16x256xf32>
    %56 = arith.mulf %53, %55 : vector<16x256xf32>
    %c6 = arith.constant 6 : index
    %c0_50 = arith.constant 0 : index
    %c0_51 = arith.constant 0 : index
    %57 = vector.load %arg4[%c6, %c0_50, %c0_51] : memref<9x16x16xf32, #tpu.memory_space<vmem>>, vector<1x16x16xf32>
    %58 = vector.shape_cast %57 : vector<1x16x16xf32> to vector<16x16xf32>
    %cst_52 = arith.constant dense<0.000000e+00> : vector<16x256xf32>
    %59 = tpu.matmul %58, %56, %cst_52 {dimension_numbers = #tpu.dot_dimension_numbers<[1], [0], [0], [1], [0, 0, 1, 1], [], []>} : vector<16x16xf32>, vector<16x256xf32>, vector<16x256xf32> -> vector<16x256xf32>
    %60 = arith.addf %52, %59 : vector<16x256xf32>
    %c0_53 = arith.constant 0 : index
    %c144 = arith.constant 144 : index
    %61 = vector.load %arg9[%c0_53, %c144] : memref<16x512xf32, #tpu.memory_space<vmem>>, vector<16x256xf32>
    %c7 = arith.constant 7 : index
    %c0_54 = arith.constant 0 : index
    %c0_55 = arith.constant 0 : index
    %62 = vector.load %arg4[%c7, %c0_54, %c0_55] : memref<9x16x16xf32, #tpu.memory_space<vmem>>, vector<1x16x16xf32>
    %63 = vector.shape_cast %62 : vector<1x16x16xf32> to vector<16x16xf32>
    %cst_56 = arith.constant dense<0.000000e+00> : vector<16x256xf32>
    %64 = tpu.matmul %63, %61, %cst_56 {dimension_numbers = #tpu.dot_dimension_numbers<[1], [0], [0], [1], [0, 0, 1, 1], [], []>} : vector<16x16xf32>, vector<16x256xf32>, vector<16x256xf32> -> vector<16x256xf32>
    %65 = arith.addf %60, %64 : vector<16x256xf32>
    %c0_57 = arith.constant 0 : index
    %c145 = arith.constant 145 : index
    %66 = vector.load %arg9[%c0_57, %c145] : memref<16x512xf32, #tpu.memory_space<vmem>>, vector<16x256xf32>
    %c0_58 = arith.constant 0 : index
    %c0_59 = arith.constant 0 : index
    %67 = vector.load %arg7[%c0_58, %c0_59] : memref<1x256xf32, #tpu.memory_space<vmem>>, vector<1x256xf32>
    %68 = vector.broadcast %67 : vector<1x256xf32> to vector<16x256xf32>
    %69 = arith.mulf %66, %68 : vector<16x256xf32>
    %c8_60 = arith.constant 8 : index
    %c0_61 = arith.constant 0 : index
    %c0_62 = arith.constant 0 : index
    %70 = vector.load %arg4[%c8_60, %c0_61, %c0_62] : memref<9x16x16xf32, #tpu.memory_space<vmem>>, vector<1x16x16xf32>
    %71 = vector.shape_cast %70 : vector<1x16x16xf32> to vector<16x16xf32>
    %cst_63 = arith.constant dense<0.000000e+00> : vector<16x256xf32>
    %72 = tpu.matmul %71, %69, %cst_63 {dimension_numbers = #tpu.dot_dimension_numbers<[1], [0], [0], [1], [0, 0, 1, 1], [], []>} : vector<16x16xf32>, vector<16x256xf32>, vector<16x256xf32> -> vector<16x256xf32>
    %73 = arith.addf %65, %72 : vector<16x256xf32>
    %c0_64 = arith.constant 0 : index
    %c0_65 = arith.constant 0 : index
    %74 = vector.load %arg5[%c0_64, %c0_65] : memref<16x1xf32, #tpu.memory_space<vmem>>, vector<16x1xf32>
    %75 = vector.broadcast %74 : vector<16x1xf32> to vector<16x256xf32>
    %76 = arith.addf %73, %75 : vector<16x256xf32>
    %cst_66 = arith.constant 0.000000e+00 : f32
    %77 = vector.broadcast %cst_66 : f32 to vector<16x256xf32>
    %78 = arith.maximumf %76, %77 : vector<16x256xf32>
    %c0_67 = arith.constant 0 : index
    %c0_68 = arith.constant 0 : index
    %c0_69 = arith.constant 0 : index
    %79 = vector.load %arg8[%c0_67, %c0_68, %c0_69] : memref<1x16x256xf32, #tpu.memory_space<vmem>>, vector<1x16x256xf32>
    %80 = vector.shape_cast %79 : vector<1x16x256xf32> to vector<16x256xf32>
    %81 = vector.shape_cast %78 : vector<16x256xf32> to vector<1x16x256xf32>
    tpu.vector_store %arg8[%c0_67, %c0_68, %c0_69], %81 {strides = array<i32>} : memref<1x16x256xf32, #tpu.memory_space<vmem>>, vector<1x16x256xf32>,
    return
  }
  func.func @transform_0(%arg0: i32) -> (i32, i32, i32) {
    %c0_i32 = arith.constant 0 : i32
    %c0_i32_0 = arith.constant 0 : i32
    %c0_i32_1 = arith.constant 0 : i32
    return %arg0, %c0_i32, %c0_i32_0 : i32, i32, i32
  }
  func.func @transform_1(%arg0: i32) -> (i32, i32, i32) {
    %c0_i32 = arith.constant 0 : i32
    %c0_i32_0 = arith.constant 0 : i32
    %c0_i32_1 = arith.constant 0 : i32
    return %arg0, %c0_i32, %c0_i32_0 : i32, i32, i32
  }
  func.func @transform_2(%arg0: i32) -> (i32, i32) {
    %c0_i32 = arith.constant 0 : i32
    %c0_i32_0 = arith.constant 0 : i32
    %c0_i32_1 = arith.constant 0 : i32
    return %c0_i32, %c0_i32_0 : i32, i32
  }
  func.func @transform_3(%arg0: i32) -> (i32, i32, i32) {
    %c0_i32 = arith.constant 0 : i32
    %c0_i32_0 = arith.constant 0 : i32
    %c0_i32_1 = arith.constant 0 : i32
    %c0_i32_2 = arith.constant 0 : i32
    return %c0_i32, %c0_i32_0, %c0_i32_1 : i32, i32, i32
  }
  func.func @transform_4(%arg0: i32) -> (i32, i32) {
    %c0_i32 = arith.constant 0 : i32
    %c0_i32_0 = arith.constant 0 : i32
    %c0_i32_1 = arith.constant 0 : i32
    return %c0_i32, %c0_i32_0 : i32, i32
  }
  func.func @transform_5(%arg0: i32) -> (i32, i32) {
    %c0_i32 = arith.constant 0 : i32
    %c0_i32_0 = arith.constant 0 : i32
    %c0_i32_1 = arith.constant 0 : i32
    return %c0_i32, %c0_i32_0 : i32, i32
  }
  func.func @transform_6(%arg0: i32) -> (i32, i32) {
    %c0_i32 = arith.constant 0 : i32
    %c0_i32_0 = arith.constant 0 : i32
    %c0_i32_1 = arith.constant 0 : i32
    return %c0_i32, %c0_i32_0 : i32, i32
  }
  func.func @transform_7(%arg0: i32) -> (i32, i32, i32) {
    %c0_i32 = arith.constant 0 : i32
    %c0_i32_0 = arith.constant 0 : i32
    %c0_i32_1 = arith.constant 0 : i32
    return %arg0, %c0_i32, %c0_i32_0 : i32, i32, i32
  }
}

</mosaic_0001>

<llo_original>
// kernel: tpu_custom_call.1
$region0: #{tpu_custom_call.1}
  #allocation0 [shape = 'u32[]', space=smem, size = 0x4, offset = 0x4, fixed_abs, tag = 'smem constant byte address 0x4 - core index']
  #allocation1 [shape = 'u32[72,128]{1,0:T(1,128)}', space=vmem, size = 0x9000, scoped, tag = 'internal scratch']
  #allocation2 [shape = 'f32[16,512]{1,0:T(8,128)}', space=vmem, size = 0x8000, scoped, tag = 'scratch operand']
  %s0 = inlined_call_operand.vmem [shape: f32[2,8,64], index: 0, kind: input, shape index: {}]
  %s1 = inlined_call_operand.hbm [shape: f32[2,8,256], index: 1, kind: input, shape index: {}]
  %s2 = inlined_call_operand.hbm [shape: f32[64,256], index: 2, kind: input, shape index: {}]
  %s3 = inlined_call_operand.hbm [shape: f32[9,16,16], index: 3, kind: input, shape index: {}]
  %s4 = inlined_call_operand.vmem [shape: f32[16,1], index: 4, kind: input, shape index: {}]
  %s5 = inlined_call_operand.vmem [shape: f32[1,256], index: 5, kind: input, shape index: {}]
  %s6 = inlined_call_operand.vmem [shape: f32[1,256], index: 6, kind: input, shape index: {}]
  %s7 = inlined_call_operand.hbm [shape: f32[2,16,256], index: 7, kind: output, shape index: {}]
  %s8 = sld [smem:[#allocation0]]
  $region73: #{tpu_custom_call.1} parent=0
    _
  %s10 = ssub.s32 1, %s8
  %s11 = scalar_select 0, %s10, %s8
  $region1: #{tpu_custom_call.1} parent=0
    #allocation3 [shape = 'u8[16384]{0}', space=vmem, size = 0x4000, scoped, tag = 'input window, operand 1']
    #allocation4 [shape = 's32[2]{0}', space=sflag, size = 0x8, scoped, tag = 'scoped memory for tpu_custom_call.1']
    #allocation5 [shape = 's32[2]{0}', space=sflag, size = 0x8, scoped, tag = 'scoped memory for tpu_custom_call.1']
    #allocation6 [shape = 'u8[65536]{0}', space=vmem, size = 0x10000, scoped, tag = 'input window, operand 2, single buffered']
    #allocation7 [shape = 's32[1]{0}', space=sflag, size = 0x4, scoped, tag = 'scoped memory for tpu_custom_call.1']
    #allocation8 [shape = 'u8[73728]{0}', space=vmem, size = 0x12000, scoped, tag = 'input window, operand 3, single buffered']
    #allocation9 [shape = 'u8[32768]{0}', space=vmem, size = 0x8000, scoped, tag = 'output window, operand 0']
    %12 = vsyncpa [#allocation4], 0
    %s13 = scalar_lea.sflag [#allocation4], 1
    %14 = vsyncpa %s13, 0
    %15 = vsyncpa [#allocation7], 0
    %16 = vsyncpa [#allocation5], 0
    %s17 = scalar_lea.sflag [#allocation5], 1
    %18 = vsyncpa %s17, 0
    loop: start=0, step=1, limit=4
    $region2: #{tpu_custom_call.1} parent=1 // loop_pre_header
      _
    $region3: #{tpu_custom_call.1} parent=1 // loop_header
      %s20 = sphi 0, %s24
      %p21 = scmp.ge.s32.totalorder %s20, 4
      %s30 = sphi 0, %s32
      %s33 = sphi 0, %s30
      %s34 = sphi 0, %s33
      %s50 = sphi 0, %s34
      %s56 = sphi 0, %s58
      %s59 = sphi 0, %s56
      %s60 = sphi 0, %s59
      %s76 = sphi 0, %s60
      %s80 = sphi 0, %s80
      %s82 = sphi 0, %s80
      %s83 = sphi 0, %s82
      %s97 = sphi 0, %s83
      %s101 = sphi 0, %s101
      %s103 = sphi 0, %s101
      %s104 = sphi 0, %s103
      %s118 = sphi 0, %s104
      %s122 = sphi 0, %s122
      %s124 = sphi 0, %s122
      %s125 = sphi 0, %s124
      %s139 = sphi 0, %s125
      %s143 = sphi 0, %s143
      %s145 = sphi 0, %s143
      %s146 = sphi 0, %s145
      %s160 = sphi 0, %s146
      %s164 = sphi 0, %s164
      %s166 = sphi 0, %s164
      %s167 = sphi 0, %s166
      %s181 = sphi 0, %s167
      %s187 = sphi 0, %s189
      %s190 = sphi 0, %s187
      %s191 = sphi 0, %s190
      %s207 = sphi 0, %s191
    $region4: #{tpu_custom_call.1} parent=1 // loop_header_branch
      %23 = sbr.rel (%p21) target = $region8
    $region5: #{tpu_custom_call.1} parent=1 // loop_body
      %s25 = ssub.s32 %s20, 1
      %s26 = ssub.s32 %s20, 2
      %s27 = sadd.s32 %s20, 1
      %s28 = ssub.s32 %s20, %s27
      %p29 = scmp.eq.s32.totalorder %s28, 0
      %s31 = sadd.s32 %s30, 1
      %s32 = scalar_select %p29, %s30, %s31
      %p35 = pneg %p29
      %p36 = scmp.eq.s32.totalorder %s20, 1
      %p37 = por %p35, %p36
      %p38 = scmp.ne.s32.totalorder %s30, %s33
      %p39 = scmp.eq.s32.totalorder %s20, 0
      %p40 = por %p38, %p39
      %p41 = scmp.ne.s32.totalorder %s30, %s33
      %p42 = scmp.eq.s32.totalorder %s25, 1
      %p43 = por %p41, %p42
      %p44 = scmp.ne.s32.totalorder %s33, %s34
      %p45 = scmp.eq.s32.totalorder %s25, 0
      %p46 = por %p44, %p45
      %p47 = scmp.ne.s32.totalorder %s33, %s34
      %p48 = scmp.eq.s32.totalorder %s26, 1
      %p49 = por %p47, %p48
      %p51 = scmp.ne.s32.totalorder %s34, %s50
      %p52 = scmp.eq.s32.totalorder %s26, 0
      %p53 = por %p51, %p52
      %s54 = ssub.s32 %s20, %s27
      %p55 = scmp.eq.s32.totalorder %s54, 0
      %s57 = sadd.s32 %s56, 1
      %s58 = scalar_select %p55, %s56, %s57
      %p61 = pneg %p55
      %p62 = scmp.eq.s32.totalorder %s20, 1
      %p63 = por %p61, %p62
      %p64 = scmp.ne.s32.totalorder %s56, %s59
      %p65 = scmp.eq.s32.totalorder %s20, 0
      %p66 = por %p64, %p65
      %p67 = scmp.ne.s32.totalorder %s56, %s59
      %p68 = scmp.eq.s32.totalorder %s25, 1
      %p69 = por %p67, %p68
      %p70 = scmp.ne.s32.totalorder %s59, %s60
      %p71 = scmp.eq.s32.totalorder %s25, 0
      %p72 = por %p70, %p71
      %p73 = scmp.ne.s32.totalorder %s59, %s60
      %p74 = scmp.eq.s32.totalorder %s26, 1
      %p75 = por %p73, %p74
      %p77 = scmp.ne.s32.totalorder %s60, %s76
      %p78 = scmp.eq.s32.totalorder %s26, 0
      %p79 = por %p77, %p78
      %s81 = sadd.s32 %s80, 1
      %p84 = scmp.eq.s32.totalorder %s20, 1
      %p85 = scmp.ne.s32.totalorder %s80, %s82
      %p86 = scmp.eq.s32.totalorder %s20, 0
      %p87 = por %p85, %p86
      %p88 = scmp.ne.s32.totalorder %s80, %s82
      %p89 = scmp.eq.s32.totalorder %s25, 1
      %p90 = por %p88, %p89
      %p91 = scmp.ne.s32.totalorder %s82, %s83
      %p92 = scmp.eq.s32.totalorder %s25, 0
      %p93 = por %p91, %p92
      %p94 = scmp.ne.s32.totalorder %s82, %s83
      %p95 = scmp.eq.s32.totalorder %s26, 1
      %p96 = por %p94, %p95
      %p98 = scmp.ne.s32.totalorder %s83, %s97
      %p99 = scmp.eq.s32.totalorder %s26, 0
      %p100 = por %p98, %p99
      %s102 = sadd.s32 %s101, 1
      %p105 = scmp.eq.s32.totalorder %s20, 1
      %p106 = scmp.ne.s32.totalorder %s101, %s103
      %p107 = scmp.eq.s32.totalorder %s20, 0
      %p108 = por %p106, %p107
      %p109 = scmp.ne.s32.totalorder %s101, %s103
      %p110 = scmp.eq.s32.totalorder %s25, 1
      %p111 = por %p109, %p110
      %p112 = scmp.ne.s32.totalorder %s103, %s104
      %p113 = scmp.eq.s32.totalorder %s25, 0
      %p114 = por %p112, %p113
      %p115 = scmp.ne.s32.totalorder %s103, %s104
      %p116 = scmp.eq.s32.totalorder %s26, 1
      %p117 = por %p115, %p116
      %p119 = scmp.ne.s32.totalorder %s104, %s118
      %p120 = scmp.eq.s32.totalorder %s26, 0
      %p121 = por %p119, %p120
      %s123 = sadd.s32 %s122, 1
      %p126 = scmp.eq.s32.totalorder %s20, 1
      %p127 = scmp.ne.s32.totalorder %s122, %s124
      %p128 = scmp.eq.s32.totalorder %s20, 0
      %p129 = por %p127, %p128
      %p130 = scmp.ne.s32.totalorder %s122, %s124
      %p131 = scmp.eq.s32.totalorder %s25, 1
      %p132 = por %p130, %p131
      %p133 = scmp.ne.s32.totalorder %s124, %s125
      %p134 = scmp.eq.s32.totalorder %s25, 0
      %p135 = por %p133, %p134
      %p136 = scmp.ne.s32.totalorder %s124, %s125
      %p137 = scmp.eq.s32.totalorder %s26, 1
      %p138 = por %p136, %p137
      %p140 = scmp.ne.s32.totalorder %s125, %s139
      %p141 = scmp.eq.s32.totalorder %s26, 0
      %p142 = por %p140, %p141
      %s144 = sadd.s32 %s143, 1
      %p147 = scmp.eq.s32.totalorder %s20, 1
      %p148 = scmp.ne.s32.totalorder %s143, %s145
      %p149 = scmp.eq.s32.totalorder %s20, 0
      %p150 = por %p148, %p149
      %p151 = scmp.ne.s32.totalorder %s143, %s145
      %p152 = scmp.eq.s32.totalorder %s25, 1
      %p153 = por %p151, %p152
      %p154 = scmp.ne.s32.totalorder %s145, %s146
      %p155 = scmp.eq.s32.totalorder %s25, 0
      %p156 = por %p154, %p155
      %p157 = scmp.ne.s32.totalorder %s145, %s146
      %p158 = scmp.eq.s32.totalorder %s26, 1
      %p159 = por %p157, %p158
      %p161 = scmp.ne.s32.totalorder %s146, %s160
      %p162 = scmp.eq.s32.totalorder %s26, 0
      %p163 = por %p161, %p162
      %s165 = sadd.s32 %s164, 1
      %p168 = scmp.eq.s32.totalorder %s20, 1
      %p169 = scmp.ne.s32.totalorder %s164, %s166
      %p170 = scmp.eq.s32.totalorder %s20, 0
      %p171 = por %p169, %p170
      %p172 = scmp.ne.s32.totalorder %s164, %s166
      %p173 = scmp.eq.s32.totalorder %s25, 1
      %p174 = por %p172, %p173
      %p175 = scmp.ne.s32.totalorder %s166, %s167
      %p176 = scmp.eq.s32.totalorder %s25, 0
      %p177 = por %p175, %p176
      %p178 = scmp.ne.s32.totalorder %s166, %s167
      %p179 = scmp.eq.s32.totalorder %s26, 1
      %p180 = por %p178, %p179
      %p182 = scmp.ne.s32.totalorder %s167, %s181
      %p183 = scmp.eq.s32.totalorder %s26, 0
      %p184 = por %p182, %p183
      %s185 = ssub.s32 %s20, %s27
      %p186 = scmp.eq.s32.totalorder %s185, 0
      %s188 = sadd.s32 %s187, 1
      %s189 = scalar_select %p186, %s187, %s188
      %p192 = pneg %p186
      %p193 = scmp.eq.s32.totalorder %s20, 1
      %p194 = por %p192, %p193
      %p195 = scmp.ne.s32.totalorder %s187, %s190
      %p196 = scmp.eq.s32.totalorder %s20, 0
      %p197 = por %p195, %p196
      %p198 = scmp.ne.s32.totalorder %s187, %s190
      %p199 = scmp.eq.s32.totalorder %s25, 1
      %p200 = por %p198, %p199
      %p201 = scmp.ne.s32.totalorder %s190, %s191
      %p202 = scmp.eq.s32.totalorder %s25, 0
      %p203 = por %p201, %p202
      %p204 = scmp.ne.s32.totalorder %s190, %s191
      %p205 = scmp.eq.s32.totalorder %s26, 1
      %p206 = por %p204, %p205
      %p208 = scmp.ne.s32.totalorder %s191, %s207
      %p209 = scmp.eq.s32.totalorder %s26, 0
      %p210 = por %p208, %p209
      %p211 = scmp.le.s32.totalorder 1, %s20
      %p212 = scmp.lt.s32.totalorder %s20, 3
      %p213 = pnand %p211, %p212
      %p214 = pneg %p213
      // Predicated region
      $region9: #{tpu_custom_call.1} parent=5 // pred_check
        _
      $region10: #{tpu_custom_call.1} parent=5 // pred_check_branch
        %216 = sbr.rel (%p213) target = $region12
      $region11: #{tpu_custom_call.1} parent=5 // pred_region
        %s217 = ssub.s32 %s20, 1
        // Predicated region
        $region13: #{tpu_custom_call.1} parent=11 // pred_check
          %p218 = pneg %p93
        $region14: #{tpu_custom_call.1} parent=11 // pred_check_branch
          %220 = sbr.rel (%p218) target = $region16
        $region15: #{tpu_custom_call.1} parent=11 // pred_region
          %222 = vsyncadd [#allocation7], 0
          %s223 = sshll.u32 %s2, 4
          %s224 = int_to_ptr.hbm [resolvable:$true] %s223
          %s225 = sshll.u32 [#allocation6], 4
          %s226 = int_to_ptr.vmem [resolvable:$true] %s225
          %231 = dma.hbm_to_vmem [thread:$0]  %s224, 2048, %s226, [#allocation7], 256, 256, 16
        $region16: #{tpu_custom_call.1} parent=11 // pred_fallthru
          _
        // Predicated region
        $region17: #{tpu_custom_call.1} parent=11 // pred_check
          %p232 = pneg %p114
        $region18: #{tpu_custom_call.1} parent=11 // pred_check_branch
          %234 = sbr.rel (%p232) target = $region20
        $region19: #{tpu_custom_call.1} parent=11 // pred_region
          %236 = vsyncadd [#allocation7], 0
          %s237 = sshll.u32 %s3, 4
          %s238 = int_to_ptr.hbm [resolvable:$true] %s237
          %s239 = sshll.u32 [#allocation8], 4
          %s240 = int_to_ptr.vmem [resolvable:$true] %s239
          %245 = dma.hbm_to_vmem [thread:$0]  %s238, 2304, %s240, [#allocation7], 128, 128, 8
        $region20: #{tpu_custom_call.1} parent=11 // pred_fallthru
          _
        // Predicated region
        $region21: #{tpu_custom_call.1} parent=11 // pred_check
          %p246 = pneg %p135
        $region22: #{tpu_custom_call.1} parent=11 // pred_check_branch
          %248 = sbr.rel (%p246) target = $region24
        $region23: #{tpu_custom_call.1} parent=11 // pred_region
          _
        $region24: #{tpu_custom_call.1} parent=11 // pred_fallthru
          _
        // Predicated region
        $region25: #{tpu_custom_call.1} parent=11 // pred_check
          %p249 = pneg %p156
        $region26: #{tpu_custom_call.1} parent=11 // pred_check_branch
          %251 = sbr.rel (%p249) target = $region28
        $region27: #{tpu_custom_call.1} parent=11 // pred_region
          _
        $region28: #{tpu_custom_call.1} parent=11 // pred_fallthru
          _
        // Predicated region
        $region29: #{tpu_custom_call.1} parent=11 // pred_check
          %p252 = pneg %p177
        $region30: #{tpu_custom_call.1} parent=11 // pred_check_branch
          %254 = sbr.rel (%p252) target = $region32
        $region31: #{tpu_custom_call.1} parent=11 // pred_region
          _
        $region32: #{tpu_custom_call.1} parent=11 // pred_fallthru
          _
      $region12: #{tpu_custom_call.1} parent=5 // pred_fallthru
        _
      %p255 = scmp.lt.s32.totalorder %s20, 2
      // Predicated region
      $region33: #{tpu_custom_call.1} parent=5 // pred_check
        %p256 = pneg %p255
      $region34: #{tpu_custom_call.1} parent=5 // pred_check_branch
        %258 = sbr.rel (%p256) target = $region36
      $region35: #{tpu_custom_call.1} parent=5 // pred_region
        // Predicated region
        $region37: #{tpu_custom_call.1} parent=35 // pred_check
          %p259 = pneg %p40
        $region38: #{tpu_custom_call.1} parent=35 // pred_check_branch
          %261 = sbr.rel (%p259) target = $region40
        $region39: #{tpu_custom_call.1} parent=35 // pred_region
          %p262 = scmp.lt.s32.totalorder %s20, 1
          %s263 = scalar_select %p262, %s20, 1
          %s264 = smul.addr %s263, 8
          %s265 = scalar_lea.vmem %s0, %s264
        $region40: #{tpu_custom_call.1} parent=35 // pred_fallthru
          _
        // Predicated region
        $region41: #{tpu_custom_call.1} parent=35 // pred_check
          %p266 = pneg %p66
        $region42: #{tpu_custom_call.1} parent=35 // pred_check_branch
          %268 = sbr.rel (%p266) target = $region44
        $region43: #{tpu_custom_call.1} parent=35 // pred_region
          %s269 = sand.u32 %s56, 1
          %s270 = scalar_lea.sflag [#allocation4], %s269
          %s271 = sand.u32 %s56, 1
          %s272 = smul.addr %s271, 16
          %s273 = scalar_lea.vmem [#allocation3], %s272
          %275 = vsyncadd %s270, 0
          %s276 = smul.addr %s20, 2
          %s277 = smul.addr %s276, 8
          %s278 = scalar_lea.hbm %s1, %s277
          %s280 = sshll.u32 %s278, 4
          %s281 = int_to_ptr.hbm [resolvable:$true] %s280
          %s282 = sshll.u32 %s273, 4
          %s283 = int_to_ptr.vmem [resolvable:$true] %s282
          %285 = dma.hbm_to_vmem [thread:$0]  %s281, 256, %s283, %s270
        $region44: #{tpu_custom_call.1} parent=35 // pred_fallthru
          _
      $region36: #{tpu_custom_call.1} parent=5 // pred_fallthru
        _
      %p286 = scmp.le.s32.totalorder 1, %s20
      %p287 = scmp.lt.s32.totalorder %s20, 3
      %p288 = pnand %p286, %p287
      %p289 = pneg %p288
      // Predicated region
      $region45: #{tpu_custom_call.1} parent=5 // pred_check
        _
      $region46: #{tpu_custom_call.1} parent=5 // pred_check_branch
        %291 = sbr.rel (%p288) target = $region48
      $region47: #{tpu_custom_call.1} parent=5 // pred_region
        %s292 = ssub.s32 %s20, 1
        %s293 = sand.u32 %s59, 1
        %s294 = scalar_lea.sflag [#allocation4], %s293
        %s295 = sand.u32 %s59, 1
        %s296 = smul.addr %s295, 16
        %s297 = scalar_lea.vmem [#allocation3], %s296
        // Predicated region
        $region49: #{tpu_custom_call.1} parent=47 // pred_check
          %p298 = pneg %p72
        $region50: #{tpu_custom_call.1} parent=47 // pred_check_branch
          %300 = sbr.rel (%p298) target = $region52
        $region51: #{tpu_custom_call.1} parent=47 // pred_region
          %302 = dma.done %s294, 256
        $region52: #{tpu_custom_call.1} parent=47 // pred_fallthru
          _
        // Predicated region
        $region53: #{tpu_custom_call.1} parent=47 // pred_check
          %p303 = pneg %p93
        $region54: #{tpu_custom_call.1} parent=47 // pred_check_branch
          %305 = sbr.rel (%p303) target = $region56
        $region55: #{tpu_custom_call.1} parent=47 // pred_region
          %307 = dma.done [#allocation7], 2048
        $region56: #{tpu_custom_call.1} parent=47 // pred_fallthru
          _
        // Predicated region
        $region57: #{tpu_custom_call.1} parent=47 // pred_check
          %p308 = pneg %p114
        $region58: #{tpu_custom_call.1} parent=47 // pred_check_branch
          %310 = sbr.rel (%p308) target = $region60
        $region59: #{tpu_custom_call.1} parent=47 // pred_region
          %312 = dma.done [#allocation7], 2304
        $region60: #{tpu_custom_call.1} parent=47 // pred_fallthru
          _
        %p313 = scmp.lt.s32.totalorder %s25, 1
        %s314 = scalar_select %p313, %s25, 1
        %s315 = smul.addr %s314, 8
        %s316 = scalar_lea.vmem %s0, %s315
        %p317 = pneg %p46
        %p318 = pneg %p43
        %s319 = sand.u32 %s59, 1
        %s320 = scalar_lea.sflag [#allocation4], %s319
        %s321 = sand.u32 %s59, 1
        %s322 = smul.addr %s321, 16
        %s323 = scalar_lea.vmem [#allocation3], %s322
        %p324 = pneg %p72
        %p325 = pneg %p69
        %p326 = pneg %p93
        %p327 = pneg %p90
        %p328 = pneg %p114
        %p329 = pneg %p111
        %p330 = pneg %p135
        %p331 = pneg %p132
        %p332 = pneg %p156
        %p333 = pneg %p153
        %p334 = pneg %p177
        %p335 = pneg %p174
        %p336 = pneg %p203
        %p337 = pneg %p200
        %s338 = sand.u32 %s190, 1
        %s339 = scalar_lea.sflag [#allocation5], %s338
        %s340 = sand.u32 %s190, 1
        %s341 = smul.addr %s340, 32
        %s342 = scalar_lea.vmem [#allocation9], %s341
        %p343 = scmp.lt.s32.totalorder %s25, 1
        %s344 = scalar_select %p343, %s25, 1
        %s345 = smul.addr %s344, 8
        %s346 = scalar_lea.vmem %s0, %s345
        %v347 = vld [vmem:[%s346] sm:$0xff]
        %v348 = vld [vmem:[#allocation6] sm:$0xff]
        %v349 = vld [vmem:[#allocation6 + $0x8] sm:$0xff]
        %v350 = vld [vmem:[#allocation6 + $0x10] sm:$0xff]
        %v351 = vld [vmem:[#allocation6 + $0x18] sm:$0xff]
        %v352 = vld [vmem:[#allocation6 + $0x20] sm:$0xff]
        %v353 = vld [vmem:[#allocation6 + $0x28] sm:$0xff]
        %v354 = vld [vmem:[#allocation6 + $0x30] sm:$0xff]
        %v355 = vld [vmem:[#allocation6 + $0x38] sm:$0xff]
        %v356 = vld [vmem:[#allocation6 + $0x40] sm:$0xff]
        %v357 = vld [vmem:[#allocation6 + $0x48] sm:$0xff]
        %v358 = vld [vmem:[#allocation6 + $0x50] sm:$0xff]
        %v359 = vld [vmem:[#allocation6 + $0x58] sm:$0xff]
        %v360 = vld [vmem:[#allocation6 + $0x60] sm:$0xff]
        %v361 = vld [vmem:[#allocation6 + $0x68] sm:$0xff]
        %v362 = vld [vmem:[#allocation6 + $0x70] sm:$0xff]
        %v363 = vld [vmem:[#allocation6 + $0x78] sm:$0xff]
        %vm364 = vcmask 523264
        %v366 = vsel %vm364, %v347, 0
        %368 = vmatpush.msra.mxu0 0.0
        %369 = vmatpush.msra.mxu0 0.0
        %370 = vmatpush.msra.mxu0 0.0
        %371 = vmatpush.msra.mxu0 0.0
        %372 = vmatpush.msra.mxu0 0.0
        %373 = vmatpush.msra.mxu0 0.0
        %374 = vmatpush.msra.mxu0 0.0
        %375 = vmatpush.msra.mxu0 0.0
        %376 = vmatpush.msra.mxu0 %v362
        %377 = vmatpush.msra.mxu0 %v360
        %378 = vmatpush.msra.mxu0 %v358
        %379 = vmatpush.msra.mxu0 %v356
        %380 = vmatpush.msra.mxu0 %v354
        %381 = vmatpush.msra.mxu0 %v352
        %382 = vmatpush.msra.mxu0 %v350
        %383 = vmatpush.msra.mxu0 %v348
        %384 = vmatmul.f32.gmra.mxu0 %v366
        %v385 = vpop.f32.mrf.mxu0
        %v386 = vadd.f32 0.0, %v385
        %387 = vdwg.mxu0
        %388 = vmatpush.msra.mxu0 0.0
        %389 = vmatpush.msra.mxu0 0.0
        %390 = vmatpush.msra.mxu0 0.0
        %391 = vmatpush.msra.mxu0 0.0
        %392 = vmatpush.msra.mxu0 0.0
        %393 = vmatpush.msra.mxu0 0.0
        %394 = vmatpush.msra.mxu0 0.0
        %395 = vmatpush.msra.mxu0 0.0
        %396 = vmatpush.msra.mxu0 %v363
        %397 = vmatpush.msra.mxu0 %v361
        %398 = vmatpush.msra.mxu0 %v359
        %399 = vmatpush.msra.mxu0 %v357
        %400 = vmatpush.msra.mxu0 %v355
        %401 = vmatpush.msra.mxu0 %v353
        %402 = vmatpush.msra.mxu0 %v351
        %403 = vmatpush.msra.mxu0 %v349
        %404 = vmatmul.f32.gmra.mxu0 %v366
        %v405 = vpop.f32.mrf.mxu0
        %v406 = vadd.f32 0.0, %v405
        %407 = vdwg.mxu0
        %408 = vst [vmem:[#allocation2] sm:$0xff] 0.0
        %409 = vst [vmem:[#allocation2 + $0x8] sm:$0xff] 0.0
        %410 = vst [vmem:[#allocation2 + $0x10] sm:$0xff] 0.0
        %411 = vst [vmem:[#allocation2 + $0x18] sm:$0xff] 0.0
        %412 = vst [vmem:[#allocation2 + $0x20] sm:$0xff] 0.0
        %413 = vst [vmem:[#allocation2 + $0x28] sm:$0xff] 0.0
        %414 = vst [vmem:[#allocation2 + $0x30] sm:$0xff] 0.0
        %415 = vst [vmem:[#allocation2 + $0x38] sm:$0xff] 0.0
        %v416 = vld [vmem:[%s297] sm:$0xff]
        %v417 = vld [vmem:[%s297 + $0x8] sm:$0xff]
        %418 = vst [vmem:[#allocation2 + $0x8] sm:$0xff] %v416
        %419 = vst [vmem:[#allocation2 + $0x10] sm:$0xff] %v417
        %420 = vst [vmem:[#allocation2 + $0x28] sm:$0xff] %v386
        %421 = vst [vmem:[#allocation2 + $0x30] sm:$0xff] %v406
        %v422 = vld [vmem:[#allocation2] sm:$0xff]
        %v423 = vld [vmem:[#allocation2 + $0x8] sm:$0xff]
        %v424 = vld [vmem:[#allocation2 + $0x10] sm:$0xff]
        %v425 = vld [vmem:[#allocation2 + $0x20] sm:$0xff]
        %v426 = vld [vmem:[#allocation2 + $0x28] sm:$0xff]
        %v427 = vld [vmem:[#allocation2 + $0x30] sm:$0xff]
        %v428 = vld [vmem:[%s5] sm:$0x3]
        %v430 = vperm.slane %v428, 0
        %v431 = vperm.slane %v428, 1
        %432 = vrot.lane.b32.xlu0 %v430, 111
        %v433 = vpop.permute.xlu0 %432
        %434 = vrot.lane.b32.xlu0 %v431, 111
        %v435 = vpop.permute.xlu0 %434
        %vm436 = vcmask 908288
        %v437 = vsel %vm436, %v433, %v435
        %v441 = vmul.f32 %v422, %v433
        %v442 = vmul.f32 %v423, %v437
        %v443 = vmul.f32 %v424, %v435
        %v444 = vmul.f32 %v425, %v433
        %v445 = vmul.f32 %v426, %v437
        %v446 = vmul.f32 %v427, %v435
        %v447 = vld [vmem:[#allocation8] sm:$0xff]
        %v448 = vld [vmem:[#allocation8 + $0x8] sm:$0xff]
        %s449 = scalar_lea.vmem [#allocation8], 16
        %v450 = vld [vmem:[%s449] sm:$0xff]
        %v451 = vld [vmem:[%s449 + $0x8] sm:$0xff]
        %458 = vrot.lane.b32.xlu0 %v422, 16
        %v459 = vpop.permute.xlu0 %458
        %460 = vrot.lane.b32.xlu0 %v423, 16
        %v461 = vpop.permute.xlu0 %460
        %462 = vrot.lane.b32.xlu0 %v424, 16
        %v463 = vpop.permute.xlu0 %462
        %464 = vrot.lane.b32.xlu0 %v425, 16
        %v465 = vpop.permute.xlu0 %464
        %466 = vrot.lane.b32.xlu0 %v426, 16
        %v467 = vpop.permute.xlu0 %466
        %468 = vrot.lane.b32.xlu0 %v427, 16
        %v469 = vpop.permute.xlu0 %468
        %vm470 = vcmask 130048
        %v471 = vsel %vm470, %v459, %v461
        %v472 = vsel %vm470, %v461, %v463
        %v473 = vsel %vm470, %v465, %v467
        %v474 = vsel %vm470, %v467, %v469
        %v480 = vsel %vm470, %v450, 0
        %v483 = vsel %vm470, %v451, 0
        %485 = vmatpush.msra.mxu0 0.0
        %486 = vmatpush.msra.mxu0 0.0
        %487 = vmatpush.msra.mxu0 0.0
        %488 = vmatpush.msra.mxu0 0.0
        %489 = vmatpush.msra.mxu0 0.0
        %490 = vmatpush.msra.mxu0 0.0
        %491 = vmatpush.msra.mxu0 0.0
        %492 = vmatpush.msra.mxu0 0.0
        %493 = vmatpush.msra.mxu0 0.0
        %494 = vmatpush.msra.mxu0 0.0
        %495 = vmatpush.msra.mxu0 0.0
        %496 = vmatpush.msra.mxu0 0.0
        %497 = vmatpush.msra.mxu0 0.0
        %498 = vmatpush.msra.mxu0 0.0
        %499 = vmatpush.msra.mxu0 %v473
        %500 = vmatpush.msra.mxu0 %v471
        %501 = vmatmul.f32.gmra.mxu0 %v480
        %v502 = vpop.f32.mrf.mxu0
        %v503 = vadd.f32 0.0, %v502
        %504 = vmatmul.f32.gmra.mxu0 %v483
        %v505 = vpop.f32.mrf.mxu0
        %v506 = vadd.f32 0.0, %v505
        %507 = vdwg.mxu0
        %508 = vmatpush.msra.mxu0 0.0
        %509 = vmatpush.msra.mxu0 0.0
        %510 = vmatpush.msra.mxu0 0.0
        %511 = vmatpush.msra.mxu0 0.0
        %512 = vmatpush.msra.mxu0 0.0
        %513 = vmatpush.msra.mxu0 0.0
        %514 = vmatpush.msra.mxu0 0.0
        %515 = vmatpush.msra.mxu0 0.0
        %516 = vmatpush.msra.mxu0 0.0
        %517 = vmatpush.msra.mxu0 0.0
        %518 = vmatpush.msra.mxu0 0.0
        %519 = vmatpush.msra.mxu0 0.0
        %520 = vmatpush.msra.mxu0 0.0
        %521 = vmatpush.msra.mxu0 0.0
        %522 = vmatpush.msra.mxu0 %v474
        %523 = vmatpush.msra.mxu0 %v472
        %524 = vmatmul.f32.gmra.mxu0 %v480
        %v525 = vpop.f32.mrf.mxu0
        %v526 = vadd.f32 0.0, %v525
        %527 = vmatmul.f32.gmra.mxu0 %v483
        %v528 = vpop.f32.mrf.mxu0
        %v529 = vadd.f32 0.0, %v528
        %530 = vdwg.mxu0
        %537 = vrot.lane.b32.xlu0 %v441, 17
        %v538 = vpop.permute.xlu0 %537
        %539 = vrot.lane.b32.xlu0 %v442, 17
        %v540 = vpop.permute.xlu0 %539
        %541 = vrot.lane.b32.xlu0 %v443, 17
        %v542 = vpop.permute.xlu0 %541
        %543 = vrot.lane.b32.xlu0 %v444, 17
        %v544 = vpop.permute.xlu0 %543
        %545 = vrot.lane.b32.xlu0 %v445, 17
        %v546 = vpop.permute.xlu0 %545
        %547 = vrot.lane.b32.xlu0 %v446, 17
        %v548 = vpop.permute.xlu0 %547
        %vm549 = vcmask 138240
        %v550 = vsel %vm549, %v538, %v540
        %v551 = vsel %vm549, %v540, %v542
        %v552 = vsel %vm549, %v544, %v546
        %v553 = vsel %vm549, %v546, %v548
        %v559 = vsel %vm470, %v447, 0
        %v562 = vsel %vm470, %v448, 0
        %564 = vmatpush.msra.mxu0 0.0
        %565 = vmatpush.msra.mxu0 0.0
        %566 = vmatpush.msra.mxu0 0.0
        %567 = vmatpush.msra.mxu0 0.0
        %568 = vmatpush.msra.mxu0 0.0
        %569 = vmatpush.msra.mxu0 0.0
        %570 = vmatpush.msra.mxu0 0.0
        %571 = vmatpush.msra.mxu0 0.0
        %572 = vmatpush.msra.mxu0 0.0
        %573 = vmatpush.msra.mxu0 0.0
        %574 = vmatpush.msra.mxu0 0.0
        %575 = vmatpush.msra.mxu0 0.0
        %576 = vmatpush.msra.mxu0 0.0
        %577 = vmatpush.msra.mxu0 0.0
        %578 = vmatpush.msra.mxu0 %v552
        %579 = vmatpush.msra.mxu0 %v550
        %580 = vmatmul.f32.gmra.mxu0 %v559
        %v581 = vpop.f32.mrf.mxu0
        %v582 = vadd.f32 %v503, %v581
        %583 = vmatmul.f32.gmra.mxu0 %v562
        %v584 = vpop.f32.mrf.mxu0
        %v585 = vadd.f32 %v506, %v584
        %586 = vdwg.mxu0
        %587 = vmatpush.msra.mxu0 0.0
        %588 = vmatpush.msra.mxu0 0.0
        %589 = vmatpush.msra.mxu0 0.0
        %590 = vmatpush.msra.mxu0 0.0
        %591 = vmatpush.msra.mxu0 0.0
        %592 = vmatpush.msra.mxu0 0.0
        %593 = vmatpush.msra.mxu0 0.0
        %594 = vmatpush.msra.mxu0 0.0
        %595 = vmatpush.msra.mxu0 0.0
        %596 = vmatpush.msra.mxu0 0.0
        %597 = vmatpush.msra.mxu0 0.0
        %598 = vmatpush.msra.mxu0 0.0
        %599 = vmatpush.msra.mxu0 0.0
        %600 = vmatpush.msra.mxu0 0.0
        %601 = vmatpush.msra.mxu0 %v553
        %602 = vmatpush.msra.mxu0 %v551
        %603 = vmatmul.f32.gmra.mxu0 %v559
        %v604 = vpop.f32.mrf.mxu0
        %v605 = vadd.f32 %v526, %v604
        %606 = vmatmul.f32.gmra.mxu0 %v562
        %v607 = vpop.f32.mrf.mxu0
        %v608 = vadd.f32 %v529, %v607
        %609 = vdwg.mxu0
        %v610 = vld [vmem:[%s6] sm:$0x3]
        %v612 = vperm.slane %v610, 0
        %v613 = vperm.slane %v610, 1
        %614 = vrot.lane.b32.xlu0 %v612, 113
        %v615 = vpop.permute.xlu0 %614
        %616 = vrot.lane.b32.xlu0 %v613, 113
        %v617 = vpop.permute.xlu0 %616
        %vm618 = vcmask 924672
        %v619 = vsel %vm618, %v615, %v617
        %v623 = vmul.f32 %v422, %v615
        %v624 = vmul.f32 %v423, %v619
        %v625 = vmul.f32 %v424, %v617
        %v626 = vmul.f32 %v425, %v615
        %v627 = vmul.f32 %v426, %v619
        %v628 = vmul.f32 %v427, %v617
        %s629 = scalar_lea.vmem [#allocation8], 32
        %v630 = vld [vmem:[%s629] sm:$0xff]
        %v631 = vld [vmem:[%s629 + $0x8] sm:$0xff]
        %638 = vrot.lane.b32.xlu0 %v623, 15
        %v639 = vpop.permute.xlu0 %638
        %640 = vrot.lane.b32.xlu0 %v624, 15
        %v641 = vpop.permute.xlu0 %640
        %642 = vrot.lane.b32.xlu0 %v625, 15
        %v643 = vpop.permute.xlu0 %642
        %644 = vrot.lane.b32.xlu0 %v626, 15
        %v645 = vpop.permute.xlu0 %644
        %646 = vrot.lane.b32.xlu0 %v627, 15
        %v647 = vpop.permute.xlu0 %646
        %648 = vrot.lane.b32.xlu0 %v628, 15
        %v649 = vpop.permute.xlu0 %648
        %vm650 = vcmask 121856
        %v651 = vsel %vm650, %v639, %v641
        %v652 = vsel %vm650, %v641, %v643
        %v653 = vsel %vm650, %v645, %v647
        %v654 = vsel %vm650, %v647, %v649
        %v660 = vsel %vm470, %v630, 0
        %v663 = vsel %vm470, %v631, 0
        %665 = vmatpush.msra.mxu0 0.0
        %666 = vmatpush.msra.mxu0 0.0
        %667 = vmatpush.msra.mxu0 0.0
        %668 = vmatpush.msra.mxu0 0.0
        %669 = vmatpush.msra.mxu0 0.0
        %670 = vmatpush.msra.mxu0 0.0
        %671 = vmatpush.msra.mxu0 0.0
        %672 = vmatpush.msra.mxu0 0.0
        %673 = vmatpush.msra.mxu0 0.0
        %674 = vmatpush.msra.mxu0 0.0
        %675 = vmatpush.msra.mxu0 0.0
        %676 = vmatpush.msra.mxu0 0.0
        %677 = vmatpush.msra.mxu0 0.0
        %678 = vmatpush.msra.mxu0 0.0
        %679 = vmatpush.msra.mxu0 %v653
        %680 = vmatpush.msra.mxu0 %v651
        %681 = vmatmul.f32.gmra.mxu0 %v660
        %v682 = vpop.f32.mrf.mxu0
        %v683 = vadd.f32 0.0, %v682
        %684 = vmatmul.f32.gmra.mxu0 %v663
        %v685 = vpop.f32.mrf.mxu0
        %v686 = vadd.f32 0.0, %v685
        %687 = vdwg.mxu0
        %688 = vmatpush.msra.mxu0 0.0
        %689 = vmatpush.msra.mxu0 0.0
        %690 = vmatpush.msra.mxu0 0.0
        %691 = vmatpush.msra.mxu0 0.0
        %692 = vmatpush.msra.mxu0 0.0
        %693 = vmatpush.msra.mxu0 0.0
        %694 = vmatpush.msra.mxu0 0.0
        %695 = vmatpush.msra.mxu0 0.0
        %696 = vmatpush.msra.mxu0 0.0
        %697 = vmatpush.msra.mxu0 0.0
        %698 = vmatpush.msra.mxu0 0.0
        %699 = vmatpush.msra.mxu0 0.0
        %700 = vmatpush.msra.mxu0 0.0
        %701 = vmatpush.msra.mxu0 0.0
        %702 = vmatpush.msra.mxu0 %v654
        %703 = vmatpush.msra.mxu0 %v652
        %704 = vmatmul.f32.gmra.mxu0 %v660
        %v705 = vpop.f32.mrf.mxu0
        %v706 = vadd.f32 0.0, %v705
        %707 = vmatmul.f32.gmra.mxu0 %v663
        %v708 = vpop.f32.mrf.mxu0
        %v709 = vadd.f32 0.0, %v708
        %710 = vdwg.mxu0
        %v711 = vadd.f32 %v582, %v683
        %v712 = vadd.f32 %v605, %v706
        %v713 = vadd.f32 %v585, %v686
        %v714 = vadd.f32 %v608, %v709
        %715 = vrot.lane.b32.xlu0 %v430, 127
        %v716 = vpop.permute.xlu0 %715
        %717 = vrot.lane.b32.xlu0 %v431, 127
        %v718 = vpop.permute.xlu0 %717
        %vm719 = vcmask 1039360
        %v720 = vsel %vm719, %v716, %v718
        %v724 = vmul.f32 %v422, %v716
        %v725 = vmul.f32 %v423, %v720
        %v726 = vmul.f32 %v424, %v718
        %v727 = vmul.f32 %v425, %v716
        %v728 = vmul.f32 %v426, %v720
        %v729 = vmul.f32 %v427, %v718
        %s730 = scalar_lea.vmem [#allocation8], 48
        %v731 = vld [vmem:[%s730] sm:$0xff]
        %v732 = vld [vmem:[%s730 + $0x8] sm:$0xff]
        %739 = vrot.lane.b32.xlu0 %v724, 1
        %v740 = vpop.permute.xlu0 %739
        %741 = vrot.lane.b32.xlu0 %v725, 1
        %v742 = vpop.permute.xlu0 %741
        %743 = vrot.lane.b32.xlu0 %v726, 1
        %v744 = vpop.permute.xlu0 %743
        %745 = vrot.lane.b32.xlu0 %v727, 1
        %v746 = vpop.permute.xlu0 %745
        %747 = vrot.lane.b32.xlu0 %v728, 1
        %v748 = vpop.permute.xlu0 %747
        %749 = vrot.lane.b32.xlu0 %v729, 1
        %v750 = vpop.permute.xlu0 %749
        %vm751 = vcmask 7168
        %v752 = vsel %vm751, %v740, %v742
        %v753 = vsel %vm751, %v742, %v744
        %v754 = vsel %vm751, %v746, %v748
        %v755 = vsel %vm751, %v748, %v750
        %v761 = vsel %vm470, %v731, 0
        %v764 = vsel %vm470, %v732, 0
        %766 = vmatpush.msra.mxu0 0.0
        %767 = vmatpush.msra.mxu0 0.0
        %768 = vmatpush.msra.mxu0 0.0
        %769 = vmatpush.msra.mxu0 0.0
        %770 = vmatpush.msra.mxu0 0.0
        %771 = vmatpush.msra.mxu0 0.0
        %772 = vmatpush.msra.mxu0 0.0
        %773 = vmatpush.msra.mxu0 0.0
        %774 = vmatpush.msra.mxu0 0.0
        %775 = vmatpush.msra.mxu0 0.0
        %776 = vmatpush.msra.mxu0 0.0
        %777 = vmatpush.msra.mxu0 0.0
        %778 = vmatpush.msra.mxu0 0.0
        %779 = vmatpush.msra.mxu0 0.0
        %780 = vmatpush.msra.mxu0 %v754
        %781 = vmatpush.msra.mxu0 %v752
        %782 = vmatmul.f32.gmra.mxu0 %v761
        %v783 = vpop.f32.mrf.mxu0
        %v784 = vadd.f32 0.0, %v783
        %785 = vmatmul.f32.gmra.mxu0 %v764
        %v786 = vpop.f32.mrf.mxu0
        %v787 = vadd.f32 0.0, %v786
        %788 = vdwg.mxu0
        %789 = vmatpush.msra.mxu0 0.0
        %790 = vmatpush.msra.mxu0 0.0
        %791 = vmatpush.msra.mxu0 0.0
        %792 = vmatpush.msra.mxu0 0.0
        %793 = vmatpush.msra.mxu0 0.0
        %794 = vmatpush.msra.mxu0 0.0
        %795 = vmatpush.msra.mxu0 0.0
        %796 = vmatpush.msra.mxu0 0.0
        %797 = vmatpush.msra.mxu0 0.0
        %798 = vmatpush.msra.mxu0 0.0
        %799 = vmatpush.msra.mxu0 0.0
        %800 = vmatpush.msra.mxu0 0.0
        %801 = vmatpush.msra.mxu0 0.0
        %802 = vmatpush.msra.mxu0 0.0
        %803 = vmatpush.msra.mxu0 %v755
        %804 = vmatpush.msra.mxu0 %v753
        %805 = vmatmul.f32.gmra.mxu0 %v761
        %v806 = vpop.f32.mrf.mxu0
        %v807 = vadd.f32 0.0, %v806
        %808 = vmatmul.f32.gmra.mxu0 %v764
        %v809 = vpop.f32.mrf.mxu0
        %v810 = vadd.f32 0.0, %v809
        %811 = vdwg.mxu0
        %v812 = vadd.f32 %v711, %v784
        %v813 = vadd.f32 %v712, %v807
        %v814 = vadd.f32 %v713, %v787
        %v815 = vadd.f32 %v714, %v810
        %s816 = scalar_lea.vmem [#allocation8], 64
        %v817 = vld [vmem:[%s816] sm:$0xff]
        %v818 = vld [vmem:[%s816 + $0x8] sm:$0xff]
        %v820 = vsel %vm470, %v817, 0
        %v823 = vsel %vm470, %v818, 0
        %825 = vmatpush.msra.mxu0 0.0
        %826 = vmatpush.msra.mxu0 0.0
        %827 = vmatpush.msra.mxu0 0.0
        %828 = vmatpush.msra.mxu0 0.0
        %829 = vmatpush.msra.mxu0 0.0
        %830 = vmatpush.msra.mxu0 0.0
        %831 = vmatpush.msra.mxu0 0.0
        %832 = vmatpush.msra.mxu0 0.0
        %833 = vmatpush.msra.mxu0 0.0
        %834 = vmatpush.msra.mxu0 0.0
        %835 = vmatpush.msra.mxu0 0.0
        %836 = vmatpush.msra.mxu0 0.0
        %837 = vmatpush.msra.mxu0 0.0
        %838 = vmatpush.msra.mxu0 0.0
        %839 = vmatpush.msra.mxu0 %v426
        %840 = vmatpush.msra.mxu0 %v423
        %841 = vmatmul.f32.gmra.mxu0 %v820
        %v842 = vpop.f32.mrf.mxu0
        %v843 = vadd.f32 0.0, %v842
        %844 = vmatmul.f32.gmra.mxu0 %v823
        %v845 = vpop.f32.mrf.mxu0
        %v846 = vadd.f32 0.0, %v845
        %847 = vdwg.mxu0
        %848 = vmatpush.msra.mxu0 0.0
        %849 = vmatpush.msra.mxu0 0.0
        %850 = vmatpush.msra.mxu0 0.0
        %851 = vmatpush.msra.mxu0 0.0
        %852 = vmatpush.msra.mxu0 0.0
        %853 = vmatpush.msra.mxu0 0.0
        %854 = vmatpush.msra.mxu0 0.0
        %855 = vmatpush.msra.mxu0 0.0
        %856 = vmatpush.msra.mxu0 0.0
        %857 = vmatpush.msra.mxu0 0.0
        %858 = vmatpush.msra.mxu0 0.0
        %859 = vmatpush.msra.mxu0 0.0
        %860 = vmatpush.msra.mxu0 0.0
        %861 = vmatpush.msra.mxu0 0.0
        %862 = vmatpush.msra.mxu0 %v427
        %863 = vmatpush.msra.mxu0 %v424
        %864 = vmatmul.f32.gmra.mxu0 %v820
        %v865 = vpop.f32.mrf.mxu0
        %v866 = vadd.f32 0.0, %v865
        %867 = vmatmul.f32.gmra.mxu0 %v823
        %v868 = vpop.f32.mrf.mxu0
        %v869 = vadd.f32 0.0, %v868
        %870 = vdwg.mxu0
        %v871 = vadd.f32 %v812, %v843
        %v872 = vadd.f32 %v813, %v866
        %v873 = vadd.f32 %v814, %v846
        %v874 = vadd.f32 %v815, %v869
        %v875 = vld [vmem:[#allocation2 + $0x8] sm:$0xff]
        %v876 = vld [vmem:[#allocation2 + $0x10] sm:$0xff]
        %v877 = vld [vmem:[#allocation2 + $0x18] sm:$0xff]
        %v878 = vld [vmem:[#allocation2 + $0x28] sm:$0xff]
        %v879 = vld [vmem:[#allocation2 + $0x30] sm:$0xff]
        %v880 = vld [vmem:[#allocation2 + $0x38] sm:$0xff]
        %881 = vrot.lane.b32.xlu0 %v612, 1
        %v882 = vpop.permute.xlu0 %881
        %883 = vrot.lane.b32.xlu0 %v613, 1
        %v884 = vpop.permute.xlu0 %883
        %v885 = vsel %vm751, %v882, %v884
        %v889 = vmul.f32 %v875, %v882
        %v890 = vmul.f32 %v876, %v885
        %v891 = vmul.f32 %v877, %v884
        %v892 = vmul.f32 %v878, %v882
        %v893 = vmul.f32 %v879, %v885
        %v894 = vmul.f32 %v880, %v884
        %s895 = scalar_lea.vmem [#allocation8], 80
        %v896 = vld [vmem:[%s895] sm:$0xff]
        %v897 = vld [vmem:[%s895 + $0x8] sm:$0xff]
        %904 = vrot.lane.b32.xlu0 %v889, 127
        %v905 = vpop.permute.xlu0 %904
        %906 = vrot.lane.b32.xlu0 %v890, 127
        %v907 = vpop.permute.xlu0 %906
        %908 = vrot.lane.b32.xlu0 %v891, 127
        %v909 = vpop.permute.xlu0 %908
        %910 = vrot.lane.b32.xlu0 %v892, 127
        %v911 = vpop.permute.xlu0 %910
        %912 = vrot.lane.b32.xlu0 %v893, 127
        %v913 = vpop.permute.xlu0 %912
        %914 = vrot.lane.b32.xlu0 %v894, 127
        %v915 = vpop.permute.xlu0 %914
        %v916 = vsel %vm719, %v905, %v907
        %v917 = vsel %vm719, %v907, %v909
        %v918 = vsel %vm719, %v911, %v913
        %v919 = vsel %vm719, %v913, %v915
        %v925 = vsel %vm470, %v896, 0
        %v928 = vsel %vm470, %v897, 0
        %930 = vmatpush.msra.mxu0 0.0
        %931 = vmatpush.msra.mxu0 0.0
        %932 = vmatpush.msra.mxu0 0.0
        %933 = vmatpush.msra.mxu0 0.0
        %934 = vmatpush.msra.mxu0 0.0
        %935 = vmatpush.msra.mxu0 0.0
        %936 = vmatpush.msra.mxu0 0.0
        %937 = vmatpush.msra.mxu0 0.0
        %938 = vmatpush.msra.mxu0 0.0
        %939 = vmatpush.msra.mxu0 0.0
        %940 = vmatpush.msra.mxu0 0.0
        %941 = vmatpush.msra.mxu0 0.0
        %942 = vmatpush.msra.mxu0 0.0
        %943 = vmatpush.msra.mxu0 0.0
        %944 = vmatpush.msra.mxu0 %v918
        %945 = vmatpush.msra.mxu0 %v916
        %946 = vmatmul.f32.gmra.mxu0 %v925
        %v947 = vpop.f32.mrf.mxu0
        %v948 = vadd.f32 0.0, %v947
        %949 = vmatmul.f32.gmra.mxu0 %v928
        %v950 = vpop.f32.mrf.mxu0
        %v951 = vadd.f32 0.0, %v950
        %952 = vdwg.mxu0
        %953 = vmatpush.msra.mxu0 0.0
        %954 = vmatpush.msra.mxu0 0.0
        %955 = vmatpush.msra.mxu0 0.0
        %956 = vmatpush.msra.mxu0 0.0
        %957 = vmatpush.msra.mxu0 0.0
        %958 = vmatpush.msra.mxu0 0.0
        %959 = vmatpush.msra.mxu0 0.0
        %960 = vmatpush.msra.mxu0 0.0
        %961 = vmatpush.msra.mxu0 0.0
        %962 = vmatpush.msra.mxu0 0.0
        %963 = vmatpush.msra.mxu0 0.0
        %964 = vmatpush.msra.mxu0 0.0
        %965 = vmatpush.msra.mxu0 0.0
        %966 = vmatpush.msra.mxu0 0.0
        %967 = vmatpush.msra.mxu0 %v919
        %968 = vmatpush.msra.mxu0 %v917
        %969 = vmatmul.f32.gmra.mxu0 %v925
        %v970 = vpop.f32.mrf.mxu0
        %v971 = vadd.f32 0.0, %v970
        %972 = vmatmul.f32.gmra.mxu0 %v928
        %v973 = vpop.f32.mrf.mxu0
        %v974 = vadd.f32 0.0, %v973
        %975 = vdwg.mxu0
        %v976 = vadd.f32 %v871, %v948
        %v977 = vadd.f32 %v872, %v971
        %v978 = vadd.f32 %v873, %v951
        %v979 = vadd.f32 %v874, %v974
        %980 = vrot.lane.b32.xlu0 %v430, 15
        %v981 = vpop.permute.xlu0 %980
        %982 = vrot.lane.b32.xlu0 %v431, 15
        %v983 = vpop.permute.xlu0 %982
        %v984 = vsel %vm650, %v981, %v983
        %v988 = vmul.f32 %v875, %v981
        %v989 = vmul.f32 %v876, %v984
        %v990 = vmul.f32 %v877, %v983
        %v991 = vmul.f32 %v878, %v981
        %v992 = vmul.f32 %v879, %v984
        %v993 = vmul.f32 %v880, %v983
        %s994 = scalar_lea.vmem [#allocation8], 96
        %v995 = vld [vmem:[%s994] sm:$0xff]
        %v996 = vld [vmem:[%s994 + $0x8] sm:$0xff]
        %1003 = vrot.lane.b32.xlu0 %v988, 113
        %v1004 = vpop.permute.xlu0 %1003
        %1005 = vrot.lane.b32.xlu0 %v989, 113
        %v1006 = vpop.permute.xlu0 %1005
        %1007 = vrot.lane.b32.xlu0 %v990, 113
        %v1008 = vpop.permute.xlu0 %1007
        %1009 = vrot.lane.b32.xlu0 %v991, 113
        %v1010 = vpop.permute.xlu0 %1009
        %1011 = vrot.lane.b32.xlu0 %v992, 113
        %v1012 = vpop.permute.xlu0 %1011
        %1013 = vrot.lane.b32.xlu0 %v993, 113
        %v1014 = vpop.permute.xlu0 %1013
        %v1015 = vsel %vm618, %v1004, %v1006
        %v1016 = vsel %vm618, %v1006, %v1008
        %v1017 = vsel %vm618, %v1010, %v1012
        %v1018 = vsel %vm618, %v1012, %v1014
        %v1024 = vsel %vm470, %v995, 0
        %v1027 = vsel %vm470, %v996, 0
        %1029 = vmatpush.msra.mxu0 0.0
        %1030 = vmatpush.msra.mxu0 0.0
        %1031 = vmatpush.msra.mxu0 0.0
        %1032 = vmatpush.msra.mxu0 0.0
        %1033 = vmatpush.msra.mxu0 0.0
        %1034 = vmatpush.msra.mxu0 0.0
        %1035 = vmatpush.msra.mxu0 0.0
        %1036 = vmatpush.msra.mxu0 0.0
        %1037 = vmatpush.msra.mxu0 0.0
        %1038 = vmatpush.msra.mxu0 0.0
        %1039 = vmatpush.msra.mxu0 0.0
        %1040 = vmatpush.msra.mxu0 0.0
        %1041 = vmatpush.msra.mxu0 0.0
        %1042 = vmatpush.msra.mxu0 0.0
        %1043 = vmatpush.msra.mxu0 %v1017
        %1044 = vmatpush.msra.mxu0 %v1015
        %1045 = vmatmul.f32.gmra.mxu0 %v1024
        %v1046 = vpop.f32.mrf.mxu0
        %v1047 = vadd.f32 0.0, %v1046
        %1048 = vmatmul.f32.gmra.mxu0 %v1027
        %v1049 = vpop.f32.mrf.mxu0
        %v1050 = vadd.f32 0.0, %v1049
        %1051 = vdwg.mxu0
        %1052 = vmatpush.msra.mxu0 0.0
        %1053 = vmatpush.msra.mxu0 0.0
        %1054 = vmatpush.msra.mxu0 0.0
        %1055 = vmatpush.msra.mxu0 0.0
        %1056 = vmatpush.msra.mxu0 0.0
        %1057 = vmatpush.msra.mxu0 0.0
        %1058 = vmatpush.msra.mxu0 0.0
        %1059 = vmatpush.msra.mxu0 0.0
        %1060 = vmatpush.msra.mxu0 0.0
        %1061 = vmatpush.msra.mxu0 0.0
        %1062 = vmatpush.msra.mxu0 0.0
        %1063 = vmatpush.msra.mxu0 0.0
        %1064 = vmatpush.msra.mxu0 0.0
        %1065 = vmatpush.msra.mxu0 0.0
        %1066 = vmatpush.msra.mxu0 %v1018
        %1067 = vmatpush.msra.mxu0 %v1016
        %1068 = vmatmul.f32.gmra.mxu0 %v1024
        %v1069 = vpop.f32.mrf.mxu0
        %v1070 = vadd.f32 0.0, %v1069
        %1071 = vmatmul.f32.gmra.mxu0 %v1027
        %v1072 = vpop.f32.mrf.mxu0
        %v1073 = vadd.f32 0.0, %v1072
        %1074 = vdwg.mxu0
        %v1075 = vadd.f32 %v976, %v1047
        %v1076 = vadd.f32 %v977, %v1070
        %v1077 = vadd.f32 %v978, %v1050
        %v1078 = vadd.f32 %v979, %v1073
        %s1079 = scalar_lea.vmem [#allocation8], 112
        %v1080 = vld [vmem:[%s1079] sm:$0xff]
        %v1081 = vld [vmem:[%s1079 + $0x8] sm:$0xff]
        %1088 = vrot.lane.b32.xlu0 %v875, 112
        %v1089 = vpop.permute.xlu0 %1088
        %1090 = vrot.lane.b32.xlu0 %v876, 112
        %v1091 = vpop.permute.xlu0 %1090
        %1092 = vrot.lane.b32.xlu0 %v877, 112
        %v1093 = vpop.permute.xlu0 %1092
        %1094 = vrot.lane.b32.xlu0 %v878, 112
        %v1095 = vpop.permute.xlu0 %1094
        %1096 = vrot.lane.b32.xlu0 %v879, 112
        %v1097 = vpop.permute.xlu0 %1096
        %1098 = vrot.lane.b32.xlu0 %v880, 112
        %v1099 = vpop.permute.xlu0 %1098
        %vm1100 = vcmask 916480
        %v1101 = vsel %vm1100, %v1089, %v1091
        %v1102 = vsel %vm1100, %v1091, %v1093
        %v1103 = vsel %vm1100, %v1095, %v1097
        %v1104 = vsel %vm1100, %v1097, %v1099
        %v1110 = vsel %vm470, %v1080, 0
        %v1113 = vsel %vm470, %v1081, 0
        %1115 = vmatpush.msra.mxu0 0.0
        %1116 = vmatpush.msra.mxu0 0.0
        %1117 = vmatpush.msra.mxu0 0.0
        %1118 = vmatpush.msra.mxu0 0.0
        %1119 = vmatpush.msra.mxu0 0.0
        %1120 = vmatpush.msra.mxu0 0.0
        %1121 = vmatpush.msra.mxu0 0.0
        %1122 = vmatpush.msra.mxu0 0.0
        %1123 = vmatpush.msra.mxu0 0.0
        %1124 = vmatpush.msra.mxu0 0.0
        %1125 = vmatpush.msra.mxu0 0.0
        %1126 = vmatpush.msra.mxu0 0.0
        %1127 = vmatpush.msra.mxu0 0.0
        %1128 = vmatpush.msra.mxu0 0.0
        %1129 = vmatpush.msra.mxu0 %v1103
        %1130 = vmatpush.msra.mxu0 %v1101
        %1131 = vmatmul.f32.gmra.mxu0 %v1110
        %v1132 = vpop.f32.mrf.mxu0
        %v1133 = vadd.f32 0.0, %v1132
        %1134 = vmatmul.f32.gmra.mxu0 %v1113
        %v1135 = vpop.f32.mrf.mxu0
        %v1136 = vadd.f32 0.0, %v1135
        %1137 = vdwg.mxu0
        %1138 = vmatpush.msra.mxu0 0.0
        %1139 = vmatpush.msra.mxu0 0.0
        %1140 = vmatpush.msra.mxu0 0.0
        %1141 = vmatpush.msra.mxu0 0.0
        %1142 = vmatpush.msra.mxu0 0.0
        %1143 = vmatpush.msra.mxu0 0.0
        %1144 = vmatpush.msra.mxu0 0.0
        %1145 = vmatpush.msra.mxu0 0.0
        %1146 = vmatpush.msra.mxu0 0.0
        %1147 = vmatpush.msra.mxu0 0.0
        %1148 = vmatpush.msra.mxu0 0.0
        %1149 = vmatpush.msra.mxu0 0.0
        %1150 = vmatpush.msra.mxu0 0.0
        %1151 = vmatpush.msra.mxu0 0.0
        %1152 = vmatpush.msra.mxu0 %v1104
        %1153 = vmatpush.msra.mxu0 %v1102
        %1154 = vmatmul.f32.gmra.mxu0 %v1110
        %v1155 = vpop.f32.mrf.mxu0
        %v1156 = vadd.f32 0.0, %v1155
        %1157 = vmatmul.f32.gmra.mxu0 %v1113
        %v1158 = vpop.f32.mrf.mxu0
        %v1159 = vadd.f32 0.0, %v1158
        %1160 = vdwg.mxu0
        %v1161 = vadd.f32 %v1075, %v1133
        %v1162 = vadd.f32 %v1076, %v1156
        %v1163 = vadd.f32 %v1077, %v1136
        %v1164 = vadd.f32 %v1078, %v1159
        %1165 = vrot.lane.b32.xlu0 %v612, 17
        %v1166 = vpop.permute.xlu0 %1165
        %1167 = vrot.lane.b32.xlu0 %v613, 17
        %v1168 = vpop.permute.xlu0 %1167
        %v1169 = vsel %vm549, %v1166, %v1168
        %v1173 = vmul.f32 %v875, %v1166
        %v1174 = vmul.f32 %v876, %v1169
        %v1175 = vmul.f32 %v877, %v1168
        %v1176 = vmul.f32 %v878, %v1166
        %v1177 = vmul.f32 %v879, %v1169
        %v1178 = vmul.f32 %v880, %v1168
        %s1179 = scalar_lea.vmem [#allocation8], 128
        %v1180 = vld [vmem:[%s1179] sm:$0xff]
        %v1181 = vld [vmem:[%s1179 + $0x8] sm:$0xff]
        %1188 = vrot.lane.b32.xlu0 %v1173, 111
        %v1189 = vpop.permute.xlu0 %1188
        %1190 = vrot.lane.b32.xlu0 %v1174, 111
        %v1191 = vpop.permute.xlu0 %1190
        %1192 = vrot.lane.b32.xlu0 %v1175, 111
        %v1193 = vpop.permute.xlu0 %1192
        %1194 = vrot.lane.b32.xlu0 %v1176, 111
        %v1195 = vpop.permute.xlu0 %1194
        %1196 = vrot.lane.b32.xlu0 %v1177, 111
        %v1197 = vpop.permute.xlu0 %1196
        %1198 = vrot.lane.b32.xlu0 %v1178, 111
        %v1199 = vpop.permute.xlu0 %1198
        %v1200 = vsel %vm436, %v1189, %v1191
        %v1201 = vsel %vm436, %v1191, %v1193
        %v1202 = vsel %vm436, %v1195, %v1197
        %v1203 = vsel %vm436, %v1197, %v1199
        %v1209 = vsel %vm470, %v1180, 0
        %v1212 = vsel %vm470, %v1181, 0
        %1214 = vmatpush.msra.mxu0 0.0
        %1215 = vmatpush.msra.mxu0 0.0
        %1216 = vmatpush.msra.mxu0 0.0
        %1217 = vmatpush.msra.mxu0 0.0
        %1218 = vmatpush.msra.mxu0 0.0
        %1219 = vmatpush.msra.mxu0 0.0
        %1220 = vmatpush.msra.mxu0 0.0
        %1221 = vmatpush.msra.mxu0 0.0
        %1222 = vmatpush.msra.mxu0 0.0
        %1223 = vmatpush.msra.mxu0 0.0
        %1224 = vmatpush.msra.mxu0 0.0
        %1225 = vmatpush.msra.mxu0 0.0
        %1226 = vmatpush.msra.mxu0 0.0
        %1227 = vmatpush.msra.mxu0 0.0
        %1228 = vmatpush.msra.mxu0 %v1202
        %1229 = vmatpush.msra.mxu0 %v1200
        %1230 = vmatmul.f32.gmra.mxu0 %v1209
        %v1231 = vpop.f32.mrf.mxu0
        %v1232 = vadd.f32 0.0, %v1231
        %1233 = vmatmul.f32.gmra.mxu0 %v1212
        %v1234 = vpop.f32.mrf.mxu0
        %v1235 = vadd.f32 0.0, %v1234
        %1236 = vdwg.mxu0
        %1237 = vmatpush.msra.mxu0 0.0
        %1238 = vmatpush.msra.mxu0 0.0
        %1239 = vmatpush.msra.mxu0 0.0
        %1240 = vmatpush.msra.mxu0 0.0
        %1241 = vmatpush.msra.mxu0 0.0
        %1242 = vmatpush.msra.mxu0 0.0
        %1243 = vmatpush.msra.mxu0 0.0
        %1244 = vmatpush.msra.mxu0 0.0
        %1245 = vmatpush.msra.mxu0 0.0
        %1246 = vmatpush.msra.mxu0 0.0
        %1247 = vmatpush.msra.mxu0 0.0
        %1248 = vmatpush.msra.mxu0 0.0
        %1249 = vmatpush.msra.mxu0 0.0
        %1250 = vmatpush.msra.mxu0 0.0
        %1251 = vmatpush.msra.mxu0 %v1203
        %1252 = vmatpush.msra.mxu0 %v1201
        %1253 = vmatmul.f32.gmra.mxu0 %v1209
        %v1254 = vpop.f32.mrf.mxu0
        %v1255 = vadd.f32 0.0, %v1254
        %1256 = vmatmul.f32.gmra.mxu0 %v1212
        %v1257 = vpop.f32.mrf.mxu0
        %v1258 = vadd.f32 0.0, %v1257
        %1259 = vdwg.mxu0
        %v1260 = vadd.f32 %v1161, %v1232
        %v1261 = vadd.f32 %v1162, %v1255
        %v1262 = vadd.f32 %v1163, %v1235
        %v1263 = vadd.f32 %v1164, %v1258
        %v1264 = vld [vmem:[%s4] sm:$0xff]
        %v1265 = vld [vmem:[%s4 + $0x8] sm:$0xff]
        %1267 = vset.pattern.permute.xlu0 0
        %1268 = vperm.xlu0 %1267, %v1264
        %v1269 = vpop.permute.xlu0 %1268
        %1272 = vset.pattern.permute.xlu0 0
        %1273 = vperm.xlu0 %1272, %v1265
        %v1274 = vpop.permute.xlu0 %1273
        %v1276 = vadd.f32 %v1260, %v1269
        %v1277 = vadd.f32 %v1261, %v1269
        %v1278 = vadd.f32 %v1262, %v1274
        %v1279 = vadd.f32 %v1263, %v1274
        %v1280 = vmax.f32 %v1276, 0.0
        %v1281 = vmax.f32 %v1277, 0.0
        %v1282 = vmax.f32 %v1278, 0.0
        %v1283 = vmax.f32 %v1279, 0.0
        %1284 = vst [vmem:[%s342] sm:$0xff] %v1280
        %1285 = vst [vmem:[%s342 + $0x8] sm:$0xff] %v1281
        %1286 = vst [vmem:[%s342 + $0x10] sm:$0xff] %v1282
        %1287 = vst [vmem:[%s342 + $0x18] sm:$0xff] %v1283
        %s1288 = sand.u32 %s190, 1
        %s1289 = scalar_lea.sflag [#allocation5], %s1288
        %s1290 = sand.u32 %s190, 1
        %s1291 = smul.addr %s1290, 32
        %s1292 = scalar_lea.vmem [#allocation9], %s1291
        // Predicated region
        $region61: #{tpu_custom_call.1} parent=47 // pred_check
          %p1293 = pneg %p200
        $region62: #{tpu_custom_call.1} parent=47 // pred_check_branch
          %1295 = sbr.rel (%p1293) target = $region64
        $region63: #{tpu_custom_call.1} parent=47 // pred_region
          %1297 = vsyncadd %s1289, 0
          %s1298 = smul.addr %s25, 4
          %s1299 = smul.addr %s1298, 8
          %s1300 = scalar_lea.hbm %s7, %s1299
          %s1301 = sshll.u32 %s1292, 4
          %s1302 = int_to_ptr.vmem [resolvable:$true] %s1301
          %s1303 = sshll.u32 %s1300, 4
          %s1304 = int_to_ptr.hbm [resolvable:$true] %s1303
          %1309 = dma.vmem_to_hbm [thread:$0]  %s1302, 512, %s1304, %s1289, 256, 256, 16
        $region64: #{tpu_custom_call.1} parent=47 // pred_fallthru
          _
      $region48: #{tpu_custom_call.1} parent=5 // pred_fallthru
        _
      %p1310 = scmp.le.s32.totalorder 2, %s20
      // Predicated region
      $region65: #{tpu_custom_call.1} parent=5 // pred_check
        %p1311 = pneg %p1310
      $region66: #{tpu_custom_call.1} parent=5 // pred_check_branch
        %1313 = sbr.rel (%p1311) target = $region68
      $region67: #{tpu_custom_call.1} parent=5 // pred_region
        %s1314 = ssub.s32 %s20, 2
        // Predicated region
        $region69: #{tpu_custom_call.1} parent=67 // pred_check
          %p1315 = pneg %p206
        $region70: #{tpu_custom_call.1} parent=67 // pred_check_branch
          %1317 = sbr.rel (%p1315) target = $region72
        $region71: #{tpu_custom_call.1} parent=67 // pred_region
          %s1318 = sand.u32 %s191, 1
          %s1319 = scalar_lea.sflag [#allocation5], %s1318
          %s1320 = sand.u32 %s191, 1
          %s1321 = smul.addr %s1320, 32
          %s1322 = scalar_lea.vmem [#allocation9], %s1321
          %1324 = dma.done %s1319, 512
        $region72: #{tpu_custom_call.1} parent=67 // pred_fallthru
          _
      $region68: #{tpu_custom_call.1} parent=5 // pred_fallthru
        _
    $region6: #{tpu_custom_call.1} parent=1 // loop_footer
      %s24 = sadd.s32 1, %s20
    $region7: #{tpu_custom_call.1} parent=1 // loop_footer_branch
      %19 = sbr.rel target = $region3
    $region8: #{tpu_custom_call.1} parent=1 // loop_exit
      _
    %1325 = vsyncpa [#allocation4], 1
    %s1326 = scalar_lea.sflag [#allocation4], 1
    %1327 = vsyncpa %s1326, 1
    %1328 = vsyncpa [#allocation7], 1
    %1329 = vsyncpa [#allocation5], 1
    %s1330 = scalar_lea.sflag [#allocation5], 1
    %1331 = vsyncpa %s1330, 1

</llo_original>
